<compile_context>
chip_gen: v5e
topology: v5e:2x2
jax: 0.10.0
libtpu: 0.0.40
codegen_flags: <defaults>
</compile_context>

<pallas_src>
import jax
import jax.numpy as jnp
from jax import lax
from jax.experimental import pallas as pl
from jax.experimental.pallas import tpu as pltpu

# ---- module hyperparameters (from gpt_embedding_only.py) --------------------
BLOCK_SIZE = 256
VOCAB_SIZE = 65                       # tiny char-level vocab
N_EMBD = 384
N_HEAD = 6
HEAD_SIZE = N_EMBD // N_HEAD          # 64
V_PAD = 128                           # pad vocab to lane width for one-hot matmul
H_PAD = 128                           # pad head axis to lane width for selector matmul

assert VOCAB_SIZE <= V_PAD            # one-hot trick requires 0 <= idx < V_PAD
assert N_HEAD <= H_PAD


# ---- fused kernel: attention+projection (once per batch tile) + residual ----
def fused_block_kernel(idx_ref, idx_last_ref, x_ref,
                       tok_k_ref, tok_q_ref, tok_v_ref,
                       pos_k_ref, pos_v_ref,
                       sel_ref, selT_ref, w_ref, b_ref,
                       out_ref, proj_ref):
    """Grid (bi, ti).  At ti==0 compute proj (tile_b, E) into VMEM scratch;
    every step writes out = x + proj broadcast over the sequence dim."""
    ti = pl.program_id(1)

    @pl.when(ti == 0)
    def _compute_proj():
        BT = idx_ref.shape[0]                 # tile_b * T
        E = tok_k_ref.shape[1]                # 384 = H * head_size
        T = pos_k_ref.shape[0]
        tb = BT // T

        # One-hot token encodings: embedding gather as MXU matmul, 384-lane wide.
        onehot_all = (idx_ref[...] ==
                      lax.broadcasted_iota(jnp.int32, (BT, V_PAD), 1)
                      ).astype(jnp.float32)                            # (tb*T, 128)
        onehot_last = (idx_last_ref[...] ==
                       lax.broadcasted_iota(jnp.int32, (tb, V_PAD), 1)
                       ).astype(jnp.float32)                           # (tb,   128)

        # Stacked embedding lookups: three (rows,128)@(128,384) matmuls.
        k = jnp.dot(onehot_all, tok_k_ref[...], preferred_element_type=jnp.float32)
        k = k.reshape(tb, T, E) + pos_k_ref[...][None, :, :]           # (tb, T, E)
        v = jnp.dot(onehot_all, tok_v_ref[...], preferred_element_type=jnp.float32)
        v = v.reshape(tb, T, E) + pos_v_ref[...][None, :, :]           # (tb, T, E)
        # tok_q table is pre-scaled by 1/sqrt(head_size) in the wrapper.
        q = jnp.dot(onehot_last, tok_q_ref[...],
                    preferred_element_type=jnp.float32)                # (tb, E)

        # Per-head scores for the single last-token query, all heads at once:
        # elementwise q*k on the VPU, one (tb*T,384)@(384,128) selector matmul.
        prod = q[:, None, :] * k                                       # (tb, T, E)
        scores = jnp.dot(prod.reshape(BT, E), sel_ref[...],
                         preferred_element_type=jnp.float32)           # (tb*T, 128)
        scores = scores.reshape(tb, T, H_PAD)

        # Softmax over the key axis T, independently per (batch, head).
        # NOTE: padded head lanes (N_HEAD..127) carry all-zero scores -> uniform
        # weights; they are dropped below by selT (all-zero rows), never read.
        scores = scores - jnp.max(scores, axis=1, keepdims=True)
        wei = jnp.exp(scores)
        wei = wei / jnp.sum(wei, axis=1, keepdims=True)
        # dropout(p=0.1) -> identity (eval mode)

        # Expand head weights back to E lanes and reduce over keys.
        wei_full = jnp.dot(wei.reshape(BT, H_PAD), selT_ref[...],
                           preferred_element_type=jnp.float32).reshape(tb, T, E)
        cat = jnp.sum(wei_full * v, axis=1)                            # (tb, E) == concat of heads

        # Output projection (Linear E -> E).
        proj_ref[...] = jnp.dot(cat, w_ref[...],
                                preferred_element_type=jnp.float32) + b_ref[...]

    # Memory-bound residual add: (tile_b, tile_t, E) + (tile_b, 1, E).
    out_ref[...] = x_ref[...] + proj_ref[...][:, None, :]


def _choose_tiles(B, T):
    """Lane-dense (tile_b, tile_t, 384) residual tiles.  tile_b also bounds the
    (tile_b, T, E) f32 attention intermediates (~8 KiB/token) that live only at
    ti==0, keeping total VMEM comfortably under the 48 MiB scoped limit."""
    tile_t = T if T <= 256 else 256                 # T <= block_size (256) in practice
    if B <= 8:
        tile_b = B                                  # block == full dim -> always legal
    else:
        # ~8 MiB of attention intermediates per batch tile; multiple of 8 rows.
        max_tb = max(8, (8 << 20) // max(1, T * 8192))
        tile_b = min(B, max(8, (max_tb // 8) * 8))
    return tile_b, tile_t


# ---- wrapper -----------------------------------------------------------------
def block_forward(x, idx, params):
    B, T = idx.shape
    E = x.shape[-1]
    H, Vp, hs = params['tok_k'].shape
    scale = float(hs) ** -0.5                       # 0.125, exact in f32

    idx_col = idx.reshape(B * T, 1).astype(jnp.int32)
    idx_last = idx[:, -1:].astype(jnp.int32)

    # Stack per-head tables into single lane-dense (rows, E) matrices
    # (columns [h*hs:(h+1)*hs] = head h, matching the torch.cat head order).
    tok_k_s = params['tok_k'].transpose(1, 0, 2).reshape(Vp, E)
    tok_q_s = params['tok_q'].transpose(1, 0, 2).reshape(Vp, E) * scale   # fold 1/sqrt(hs)
    tok_v_s = params['tok_v'].transpose(1, 0, 2).reshape(Vp, E)
    pos_k_s = params['pos_k'][:, BLOCK_SIZE - T:BLOCK_SIZE, :].transpose(1, 0, 2).reshape(T, E)
    pos_v_s = params['pos_v'][:, BLOCK_SIZE - T:BLOCK_SIZE, :].transpose(1, 0, 2).reshape(T, E)
    w_t = params['proj_w'].T                        # (in, out) = (E, E)
    b = params['proj_b'].reshape(1, E)

    # Head-selector matrices, precomputed once (hoisted out of the kernel):
    #   sel[e, h]  = 1 if e // hs == h   (reduce E -> per-head score)
    #   selT[h, e] = sel[e, h]           (expand per-head weight -> E lanes)
    sel = (jnp.arange(E)[:, None] // hs == jnp.arange(H_PAD)[None, :]).astype(jnp.float32)
    selT = sel.T

    tile_b, tile_t = _choose_tiles(B, T)
    grid = (pl.cdiv(B, tile_b), pl.cdiv(T, tile_t))

    resident2 = lambda shape: pl.BlockSpec(shape, lambda bi, ti: (0, 0))

    x_out = pl.pallas_call(
        fused_block_kernel,
        out_shape=jax.ShapeDtypeStruct((B, T, E), jnp.float32),
        grid=grid,
        in_specs=[
            pl.BlockSpec((tile_b * T, 1), lambda bi, ti: (bi, 0)),        # idx (flat, per batch tile)
            pl.BlockSpec((tile_b, 1), lambda bi, ti: (bi, 0)),            # idx last token
            pl.BlockSpec((tile_b, tile_t, E), lambda bi, ti: (bi, ti, 0)),  # x tile
            resident2((Vp, E)),                                           # tok_k (stacked)
            resident2((Vp, E)),                                           # tok_q (stacked, pre-scaled)
            resident2((Vp, E)),                                           # tok_v (stacked)
            resident2((T, E)),                                            # pos_k (stacked)
            resident2((T, E)),                                            # pos_v (stacked)
            resident2((E, H_PAD)),                                        # sel
            resident2((H_PAD, E)),                                        # selT
            resident2((E, E)),                                            # proj weight^T
            resident2((1, E)),                                            # proj bias
        ],
        out_specs=pl.BlockSpec((tile_b, tile_t, E), lambda bi, ti: (bi, ti, 0)),
        scratch_shapes=[pltpu.VMEM((tile_b, E), jnp.float32)],            # proj carried across ti
        compiler_params=pltpu.CompilerParams(
            dimension_semantics=("parallel", "arbitrary"),
            vmem_limit_bytes=48 * 1024 * 1024),
    )(idx_col, idx_last, x,
      tok_k_s, tok_q_s, tok_v_s, pos_k_s, pos_v_s, sel, selT, w_t, b)
    return x_out, idx


# ---- pure-JAX reference (for correctness check) -------------------------------
def reference_forward(x, idx, params):
    B, T = idx.shape
    hi = jax.lax.Precision.HIGHEST
    outs = []
    for h in range(N_HEAD):
        q = jnp.take(params['tok_q'][h], idx[:, -1:], axis=0)                       # (B,1,hs)
        k = (jnp.take(params['tok_k'][h], idx, axis=0)
             + params['pos_k'][h, BLOCK_SIZE - T:BLOCK_SIZE])                       # (B,T,hs)
        wei = jnp.einsum('bqd,bkd->bqk', q, k, precision=hi) * HEAD_SIZE ** -0.5
        wei = jax.nn.softmax(wei, axis=-1)
        v = (jnp.take(params['tok_v'][h], idx, axis=0)
             + params['pos_v'][h, BLOCK_SIZE - T:BLOCK_SIZE])
        outs.append(jnp.einsum('bqk,bkd->bqd', wei, v, precision=hi))               # (B,1,hs)
    cat = jnp.concatenate(outs, axis=-1)                                            # (B,1,E)
    proj = jnp.einsum('bqe,fe->bqf', cat, params['proj_w'], precision=hi) + params['proj_b']
    return x + proj, idx


# ---- deterministic parameter init ---------------------------------------------
def init_params(key):
    ks = jax.random.split(key, 8)
    std = 0.02
    return {
        # per-head token embedding tables, padded to V_PAD rows (rows >= vocab unused)
        'tok_k': std * jax.random.normal(ks[0], (N_HEAD, V_PAD, HEAD_SIZE), jnp.float32),
        'tok_q': std * jax.random.normal(ks[1], (N_HEAD, V_PAD, HEAD_SIZE), jnp.float32),
        'tok_v': std * jax.random.normal(ks[2], (N_HEAD, V_PAD, HEAD_SIZE), jnp.float32),
        # per-head position embedding tables
        'pos_k': std * jax.random.normal(ks[3], (N_HEAD, BLOCK_SIZE, HEAD_SIZE), jnp.float32),
        'pos_v': std * jax.random.normal(ks[4], (N_HEAD, BLOCK_SIZE, HEAD_SIZE), jnp.float32),
        # output projection (PyTorch Linear convention: weight is (out, in))
        'proj_w': std * jax.random.normal(ks[5], (N_EMBD, N_EMBD), jnp.float32),
        'proj_b': std * jax.random.normal(ks[6], (N_EMBD,), jnp.float32),
    }


if __name__ == "__main__":
    B, T = 2, 8
    key = jax.random.PRNGKey(0)
    kx, kidx, kp = jax.random.split(key, 3)

    x = jax.random.normal(kx, (B, T, N_EMBD), jnp.float32)
    idx = jax.random.randint(kidx, (B, T), 0, VOCAB_SIZE, dtype=jnp.int32)
    params = init_params(kp)

    x_out, idx_out = jax.jit(block_forward)(x, idx, params)
    x_out = jax.block_until_ready(x_out)

    x_ref, _ = reference_forward(x, idx, params)
    assert x_out.shape == (B, T, N_EMBD)
    err = jnp.max(jnp.abs(x_out - x_ref))
    assert jnp.allclose(x_out, x_ref, atol=1e-4, rtol=1e-4), f"max abs err {err}"
    assert jnp.array_equal(idx_out, idx)

    print("KERNEL_OK")
</pallas_src>

<mosaic_0001>
module attributes {stable_mosaic.version = 11 : i64} {
  func.func @fused_block_kernel(%arg0: i32, %arg1: i32, %arg2: memref<16x1xi32, #tpu.memory_space<vmem>>, %arg3: memref<2x1xi32, #tpu.memory_space<vmem>>, %arg4: memref<2x8x384xf32, #tpu.memory_space<vmem>>, %arg5: memref<128x384xf32, #tpu.memory_space<vmem>>, %arg6: memref<128x384xf32, #tpu.memory_space<vmem>>, %arg7: memref<128x384xf32, #tpu.memory_space<vmem>>, %arg8: memref<8x384xf32, #tpu.memory_space<vmem>>, %arg9: memref<8x384xf32, #tpu.memory_space<vmem>>, %arg10: memref<384x128xf32, #tpu.memory_space<vmem>>, %arg11: memref<128x384xf32, #tpu.memory_space<vmem>>, %arg12: memref<384x384xf32, #tpu.memory_space<vmem>>, %arg13: memref<1x384xf32, #tpu.memory_space<vmem>>, %arg14: memref<2x8x384xf32, #tpu.memory_space<vmem>>, %arg15: memref<2x384xf32, #tpu.memory_space<vmem>>) attributes {dimension_semantics = [#tpu.dimension_semantics<parallel>, #tpu.dimension_semantics<arbitrary>], iteration_bounds = array<i64: 1, 1>, scalar_prefetch = 0 : i64, scratch_operands = 1 : i64, tpu.core_type = #tpu.core_type<tc>, window_params = [{transform_indices = @transform_0, window_bounds = array<i64: 16, 1>}, {transform_indices = @transform_1, window_bounds = array<i64: 2, 1>}, {transform_indices = @transform_2, window_bounds = array<i64: 2, 8, 384>}, {pipeline_mode = #tpu.pipeline_mode<synchronous>, transform_indices = @transform_3, window_bounds = array<i64: 128, 384>}, {pipeline_mode = #tpu.pipeline_mode<synchronous>, transform_indices = @transform_4, window_bounds = array<i64: 128, 384>}, {pipeline_mode = #tpu.pipeline_mode<synchronous>, transform_indices = @transform_5, window_bounds = array<i64: 128, 384>}, {pipeline_mode = #tpu.pipeline_mode<synchronous>, transform_indices = @transform_6, window_bounds = array<i64: 8, 384>}, {pipeline_mode = #tpu.pipeline_mode<synchronous>, transform_indices = @transform_7, window_bounds = array<i64: 8, 384>}, {pipeline_mode = #tpu.pipeline_mode<synchronous>, transform_indices = @transform_8, window_bounds = array<i64: 384, 128>}, {pipeline_mode = #tpu.pipeline_mode<synchronous>, transform_indices = @transform_9, window_bounds = array<i64: 128, 384>}, {pipeline_mode = #tpu.pipeline_mode<synchronous>, transform_indices = @transform_10, window_bounds = array<i64: 384, 384>}, {pipeline_mode = #tpu.pipeline_mode<synchronous>, transform_indices = @transform_11, window_bounds = array<i64: 1, 384>}, {transform_indices = @transform_12, window_bounds = array<i64: 2, 8, 384>}]} {
    %c0_i32 = arith.constant 0 : i32
    %0 = arith.cmpi eq, %arg1, %c0_i32 : i32
    %1 = arith.extui %0 : i1 to i32
    %c0_i32_0 = arith.constant 0 : i32
    %2 = arith.cmpi ne, %1, %c0_i32_0 : i32
    scf.if %2 {
      %c0_8 = arith.constant 0 : index
      %c0_9 = arith.constant 0 : index
      %9 = vector.load %arg2[%c0_8, %c0_9] : memref<16x1xi32, #tpu.memory_space<vmem>>, vector<16x1xi32>
      %10 = tpu.iota {dimensions = array<i32: 1>} : vector<16x128xi32>
      %11 = vector.broadcast %9 : vector<16x1xi32> to vector<16x128xi32>
      %12 = arith.cmpi eq, %11, %10 : vector<16x128xi32>
      %13 = arith.extui %12 : vector<16x128xi1> to vector<16x128xi32>
      %14 = arith.sitofp %13 : vector<16x128xi32> to vector<16x128xf32>
      %c0_10 = arith.constant 0 : index
      %c0_11 = arith.constant 0 : index
      %15 = vector.load %arg3[%c0_10, %c0_11] : memref<2x1xi32, #tpu.memory_space<vmem>>, vector<2x1xi32>
      %16 = tpu.iota {dimensions = array<i32: 1>} : vector<2x128xi32>
      %17 = vector.broadcast %15 : vector<2x1xi32> to vector<2x128xi32>
      %18 = arith.cmpi eq, %17, %16 : vector<2x128xi32>
      %19 = arith.extui %18 : vector<2x128xi1> to vector<2x128xi32>
      %20 = arith.sitofp %19 : vector<2x128xi32> to vector<2x128xf32>
      %c0_12 = arith.constant 0 : index
      %c0_13 = arith.constant 0 : index
      %21 = vector.load %arg5[%c0_12, %c0_13] : memref<128x384xf32, #tpu.memory_space<vmem>>, vector<128x384xf32>
      %cst = arith.constant dense<0.000000e+00> : vector<16x384xf32>
      %22 = tpu.matmul %14, %21, %cst {dimension_numbers = #tpu.dot_dimension_numbers<[1], [0], [0], [1], [0, 0, 1, 1], [], []>} : vector<16x128xf32>, vector<128x384xf32>, vector<16x384xf32> -> vector<16x384xf32>
      %23 = vector.shape_cast %22 : vector<16x384xf32> to vector<2x8x384xf32>
      %c0_14 = arith.constant 0 : index
      %c0_15 = arith.constant 0 : index
      %24 = vector.load %arg8[%c0_14, %c0_15] : memref<8x384xf32, #tpu.memory_space<vmem>>, vector<8x384xf32>
      %25 = vector.shape_cast %24 : vector<8x384xf32> to vector<1x8x384xf32>
      %26 = vector.broadcast %25 : vector<1x8x384xf32> to vector<2x8x384xf32>
      %27 = arith.addf %23, %26 : vector<2x8x384xf32>
      %c0_16 = arith.constant 0 : index
      %c0_17 = arith.constant 0 : index
      %28 = vector.load %arg7[%c0_16, %c0_17] : memref<128x384xf32, #tpu.memory_space<vmem>>, vector<128x384xf32>
      %cst_18 = arith.constant dense<0.000000e+00> : vector<16x384xf32>
      %29 = tpu.matmul %14, %28, %cst_18 {dimension_numbers = #tpu.dot_dimension_numbers<[1], [0], [0], [1], [0, 0, 1, 1], [], []>} : vector<16x128xf32>, vector<128x384xf32>, vector<16x384xf32> -> vector<16x384xf32>
      %30 = vector.shape_cast %29 : vector<16x384xf32> to vector<2x8x384xf32>
      %c0_19 = arith.constant 0 : index
      %c0_20 = arith.constant 0 : index
      %31 = vector.load %arg9[%c0_19, %c0_20] : memref<8x384xf32, #tpu.memory_space<vmem>>, vector<8x384xf32>
      %32 = vector.shape_cast %31 : vector<8x384xf32> to vector<1x8x384xf32>
      %33 = vector.broadcast %32 : vector<1x8x384xf32> to vector<2x8x384xf32>
      %34 = arith.addf %30, %33 : vector<2x8x384xf32>
      %c0_21 = arith.constant 0 : index
      %c0_22 = arith.constant 0 : index
      %35 = vector.load %arg6[%c0_21, %c0_22] : memref<128x384xf32, #tpu.memory_space<vmem>>, vector<128x384xf32>
      %cst_23 = arith.constant dense<0.000000e+00> : vector<2x384xf32>
      %36 = tpu.matmul %20, %35, %cst_23 {dimension_numbers = #tpu.dot_dimension_numbers<[1], [0], [0], [1], [0, 0, 1, 1], [], []>} : vector<2x128xf32>, vector<128x384xf32>, vector<2x384xf32> -> vector<2x384xf32>
      %37 = vector.shape_cast %36 : vector<2x384xf32> to vector<2x1x384xf32>
      %38 = vector.broadcast %37 : vector<2x1x384xf32> to vector<2x8x384xf32>
      %39 = arith.mulf %38, %27 : vector<2x8x384xf32>
      %40 = vector.shape_cast %39 : vector<2x8x384xf32> to vector<16x384xf32>
      %c0_24 = arith.constant 0 : index
      %c0_25 = arith.constant 0 : index
      %41 = vector.load %arg10[%c0_24, %c0_25] : memref<384x128xf32, #tpu.memory_space<vmem>>, vector<384x128xf32>
      %cst_26 = arith.constant dense<0.000000e+00> : vector<16x128xf32>
      %42 = tpu.matmul %40, %41, %cst_26 {dimension_numbers = #tpu.dot_dimension_numbers<[1], [0], [0], [1], [0, 0, 1, 1], [], []>} : vector<16x384xf32>, vector<384x128xf32>, vector<16x128xf32> -> vector<16x128xf32>
      %43 = vector.shape_cast %42 : vector<16x128xf32> to vector<2x8x128xf32>
      %cst_27 = arith.constant dense<0xFF800000> : vector<2x128xf32>
      %44 = vector.multi_reduction <maximumf>, %43, %cst_27 [1] : vector<2x8x128xf32> to vector<2x128xf32>
      %45 = vector.shape_cast %44 : vector<2x128xf32> to vector<2x1x128xf32>
      %46 = vector.broadcast %45 : vector<2x1x128xf32> to vector<2x8x128xf32>
      %47 = arith.subf %43, %46 : vector<2x8x128xf32>
      %48 = math.exp %47 : vector<2x8x128xf32>
      %cst_28 = arith.constant dense<0.000000e+00> : vector<2x128xf32>
      %49 = vector.multi_reduction <add>, %48, %cst_28 [1] : vector<2x8x128xf32> to vector<2x128xf32>
      %50 = vector.shape_cast %49 : vector<2x128xf32> to vector<2x1x128xf32>
      %51 = vector.broadcast %50 : vector<2x1x128xf32> to vector<2x8x128xf32>
      %52 = arith.divf %48, %51 : vector<2x8x128xf32>
      %53 = vector.shape_cast %52 : vector<2x8x128xf32> to vector<16x128xf32>
      %c0_29 = arith.constant 0 : index
      %c0_30 = arith.constant 0 : index
      %54 = vector.load %arg11[%c0_29, %c0_30] : memref<128x384xf32, #tpu.memory_space<vmem>>, vector<128x384xf32>
      %cst_31 = arith.constant dense<0.000000e+00> : vector<16x384xf32>
      %55 = tpu.matmul %53, %54, %cst_31 {dimension_numbers = #tpu.dot_dimension_numbers<[1], [0], [0], [1], [0, 0, 1, 1], [], []>} : vector<16x128xf32>, vector<128x384xf32>, vector<16x384xf32> -> vector<16x384xf32>
      %56 = vector.shape_cast %55 : vector<16x384xf32> to vector<2x8x384xf32>
      %57 = arith.mulf %56, %34 : vector<2x8x384xf32>
      %cst_32 = arith.constant dense<0.000000e+00> : vector<2x384xf32>
      %58 = vector.multi_reduction <add>, %57, %cst_32 [1] : vector<2x8x384xf32> to vector<2x384xf32>
      %c0_33 = arith.constant 0 : index
      %c0_34 = arith.constant 0 : index
      %59 = vector.load %arg12[%c0_33, %c0_34] : memref<384x384xf32, #tpu.memory_space<vmem>>, vector<384x384xf32>
      %cst_35 = arith.constant dense<0.000000e+00> : vector<2x384xf32>
      %60 = tpu.matmul %58, %59, %cst_35 {dimension_numbers = #tpu.dot_dimension_numbers<[1], [0], [0], [1], [0, 0, 1, 1], [], []>} : vector<2x384xf32>, vector<384x384xf32>, vector<2x384xf32> -> vector<2x384xf32>
      %c0_36 = arith.constant 0 : index
      %c0_37 = arith.constant 0 : index
      %61 = vector.load %arg13[%c0_36, %c0_37] : memref<1x384xf32, #tpu.memory_space<vmem>>, vector<1x384xf32>
      %62 = vector.broadcast %61 : vector<1x384xf32> to vector<2x384xf32>
      %63 = arith.addf %60, %62 : vector<2x384xf32>
      %c0_38 = arith.constant 0 : index
      %c0_39 = arith.constant 0 : index
      %64 = vector.load %arg15[%c0_38, %c0_39] : memref<2x384xf32, #tpu.memory_space<vmem>>, vector<2x384xf32>
      tpu.vector_store %arg15[%c0_38, %c0_39], %63 {strides = array<i32>} : memref<2x384xf32, #tpu.memory_space<vmem>>, vector<2x384xf32>,
    } else {
    }
    %c0 = arith.constant 0 : index
    %c0_1 = arith.constant 0 : index
    %c0_2 = arith.constant 0 : index
    %3 = vector.load %arg4[%c0, %c0_1, %c0_2] : memref<2x8x384xf32, #tpu.memory_space<vmem>>, vector<2x8x384xf32>
    %c0_3 = arith.constant 0 : index
    %c0_4 = arith.constant 0 : index
    %4 = vector.load %arg15[%c0_3, %c0_4] : memref<2x384xf32, #tpu.memory_space<vmem>>, vector<2x384xf32>
    %5 = vector.shape_cast %4 : vector<2x384xf32> to vector<2x1x384xf32>
    %6 = vector.broadcast %5 : vector<2x1x384xf32> to vector<2x8x384xf32>
    %7 = arith.addf %3, %6 : vector<2x8x384xf32>
    %c0_5 = arith.constant 0 : index
    %c0_6 = arith.constant 0 : index
    %c0_7 = arith.constant 0 : index
    %8 = vector.load %arg14[%c0_5, %c0_6, %c0_7] : memref<2x8x384xf32, #tpu.memory_space<vmem>>, vector<2x8x384xf32>
    tpu.vector_store %arg14[%c0_5, %c0_6, %c0_7], %7 {strides = array<i32>} : memref<2x8x384xf32, #tpu.memory_space<vmem>>, vector<2x8x384xf32>,
    return
  }
  func.func @transform_0(%arg0: i32, %arg1: i32) -> (i32, i32) {
    %c0_i32 = arith.constant 0 : i32
    %c0_i32_0 = arith.constant 0 : i32
    return %arg0, %c0_i32 : i32, i32
  }
  func.func @transform_1(%arg0: i32, %arg1: i32) -> (i32, i32) {
    %c0_i32 = arith.constant 0 : i32
    %c0_i32_0 = arith.constant 0 : i32
    return %arg0, %c0_i32 : i32, i32
  }
  func.func @transform_2(%arg0: i32, %arg1: i32) -> (i32, i32, i32) {
    %c0_i32 = arith.constant 0 : i32
    %c0_i32_0 = arith.constant 0 : i32
    return %arg0, %arg1, %c0_i32 : i32, i32, i32
  }
  func.func @transform_3(%arg0: i32, %arg1: i32) -> (i32, i32) {
    %c0_i32 = arith.constant 0 : i32
    %c0_i32_0 = arith.constant 0 : i32
    %c0_i32_1 = arith.constant 0 : i32
    return %c0_i32, %c0_i32_0 : i32, i32
  }
  func.func @transform_4(%arg0: i32, %arg1: i32) -> (i32, i32) {
    %c0_i32 = arith.constant 0 : i32
    %c0_i32_0 = arith.constant 0 : i32
    %c0_i32_1 = arith.constant 0 : i32
    return %c0_i32, %c0_i32_0 : i32, i32
  }
  func.func @transform_5(%arg0: i32, %arg1: i32) -> (i32, i32) {
    %c0_i32 = arith.constant 0 : i32
    %c0_i32_0 = arith.constant 0 : i32
    %c0_i32_1 = arith.constant 0 : i32
    return %c0_i32, %c0_i32_0 : i32, i32
  }
  func.func @transform_6(%arg0: i32, %arg1: i32) -> (i32, i32) {
    %c0_i32 = arith.constant 0 : i32
    %c0_i32_0 = arith.constant 0 : i32
    %c0_i32_1 = arith.constant 0 : i32
    return %c0_i32, %c0_i32_0 : i32, i32
  }
  func.func @transform_7(%arg0: i32, %arg1: i32) -> (i32, i32) {
    %c0_i32 = arith.constant 0 : i32
    %c0_i32_0 = arith.constant 0 : i32
    %c0_i32_1 = arith.constant 0 : i32
    return %c0_i32, %c0_i32_0 : i32, i32
  }
  func.func @transform_8(%arg0: i32, %arg1: i32) -> (i32, i32) {
    %c0_i32 = arith.constant 0 : i32
    %c0_i32_0 = arith.constant 0 : i32
    %c0_i32_1 = arith.constant 0 : i32
    return %c0_i32, %c0_i32_0 : i32, i32
  }
  func.func @transform_9(%arg0: i32, %arg1: i32) -> (i32, i32) {
    %c0_i32 = arith.constant 0 : i32
    %c0_i32_0 = arith.constant 0 : i32
    %c0_i32_1 = arith.constant 0 : i32
    return %c0_i32, %c0_i32_0 : i32, i32
  }
  func.func @transform_10(%arg0: i32, %arg1: i32) -> (i32, i32) {
    %c0_i32 = arith.constant 0 : i32
    %c0_i32_0 = arith.constant 0 : i32
    %c0_i32_1 = arith.constant 0 : i32
    return %c0_i32, %c0_i32_0 : i32, i32
  }
  func.func @transform_11(%arg0: i32, %arg1: i32) -> (i32, i32) {
    %c0_i32 = arith.constant 0 : i32
    %c0_i32_0 = arith.constant 0 : i32
    %c0_i32_1 = arith.constant 0 : i32
    return %c0_i32, %c0_i32_0 : i32, i32
  }
  func.func @transform_12(%arg0: i32, %arg1: i32) -> (i32, i32, i32) {
    %c0_i32 = arith.constant 0 : i32
    %c0_i32_0 = arith.constant 0 : i32
    return %arg0, %arg1, %c0_i32 : i32, i32, i32
  }
}

</mosaic_0001>

<llo_original>
// kernel: block_forward.1
$region0: #{block_forward.1}
  #allocation0 [shape = 'u32[]', space=smem, size = 0x4, offset = 0x4, fixed_abs, tag = 'smem constant byte address 0x4 - core index']
  #allocation1 [shape = 'u32[72,128]{1,0:T(1,128)}', space=vmem, size = 0x9000, scoped, tag = 'internal scratch']
  #allocation2 [shape = 'f32[2,384]{1,0:T(2,128)}', space=vmem, size = 0xc00, scoped, tag = 'scratch operand']
  %s0 = inlined_call_operand.vmem [shape: s32[16,1], index: 0, kind: input, shape index: {}]
  %s1 = inlined_call_operand.vmem [shape: s32[2,1], index: 1, kind: input, shape index: {}]
  %s2 = inlined_call_operand.vmem [shape: f32[2,8,384], index: 2, kind: input, shape index: {}]
  %s3 = inlined_call_operand.vmem [shape: f32[128,384], index: 3, kind: input, shape index: {}]
  %s4 = inlined_call_operand.vmem [shape: f32[128,384], index: 4, kind: input, shape index: {}]
  %s5 = inlined_call_operand.vmem [shape: f32[128,384], index: 5, kind: input, shape index: {}]
  %s6 = inlined_call_operand.vmem [shape: f32[8,384], index: 6, kind: input, shape index: {}]
  %s7 = inlined_call_operand.vmem [shape: f32[8,384], index: 7, kind: input, shape index: {}]
  %s8 = inlined_call_operand.vmem [shape: f32[384,128], index: 8, kind: input, shape index: {}]
  %s9 = inlined_call_operand.vmem [shape: f32[128,384], index: 9, kind: input, shape index: {}]
  %s10 = inlined_call_operand.vmem [shape: f32[384,384], index: 10, kind: input, shape index: {}]
  %s11 = inlined_call_operand.vmem [shape: f32[1,384], index: 11, kind: input, shape index: {}]
  %s12 = inlined_call_operand.hbm [shape: f32[2,8,384], index: 12, kind: output, shape index: {}]
  %s13 = sld [smem:[#allocation0]]
  $region62: #{block_forward.1} parent=0
    _
  %s15 = ssub.s32 1, %s13
  %s16 = scalar_select 0, %s15, %s13
  $region1: #{block_forward.1} parent=0
    #allocation3 [shape = 'u8[24576]{0}', space=vmem, size = 0x6000, scoped, tag = 'output window, operand 0, single buffered']
    #allocation4 [shape = 's32[1]{0}', space=sflag, size = 0x4, scoped, tag = 'scoped memory for block_forward.1']
    %17 = vsyncpa [#allocation4], 0
    // Predicated region
    $region2: #{block_forward.1} parent=1 // pred_check
      _
    $region3: #{block_forward.1} parent=1 // pred_check_branch
      %19 = sbr.rel (0) target = $region5
    $region4: #{block_forward.1} parent=1 // pred_region
      _
    $region5: #{block_forward.1} parent=1 // pred_fallthru
      _
    // Predicated region
    $region6: #{block_forward.1} parent=1 // pred_check
      _
    $region7: #{block_forward.1} parent=1 // pred_check_branch
      %21 = sbr.rel (0) target = $region9
    $region8: #{block_forward.1} parent=1 // pred_region
      _
    $region9: #{block_forward.1} parent=1 // pred_fallthru
      _
    // Predicated region
    $region10: #{block_forward.1} parent=1 // pred_check
      _
    $region11: #{block_forward.1} parent=1 // pred_check_branch
      %23 = sbr.rel (0) target = $region13
    $region12: #{block_forward.1} parent=1 // pred_region
      _
    $region13: #{block_forward.1} parent=1 // pred_fallthru
      _
    // Predicated region
    $region14: #{block_forward.1} parent=1 // pred_check
      _
    $region15: #{block_forward.1} parent=1 // pred_check_branch
      %25 = sbr.rel (0) target = $region17
    $region16: #{block_forward.1} parent=1 // pred_region
      _
    $region17: #{block_forward.1} parent=1 // pred_fallthru
      _
    // Predicated region
    $region18: #{block_forward.1} parent=1 // pred_check
      _
    $region19: #{block_forward.1} parent=1 // pred_check_branch
      %27 = sbr.rel (0) target = $region21
    $region20: #{block_forward.1} parent=1 // pred_region
      _
    $region21: #{block_forward.1} parent=1 // pred_fallthru
      _
    // Predicated region
    $region22: #{block_forward.1} parent=1 // pred_check
      _
    $region23: #{block_forward.1} parent=1 // pred_check_branch
      %29 = sbr.rel (0) target = $region25
    $region24: #{block_forward.1} parent=1 // pred_region
      _
    $region25: #{block_forward.1} parent=1 // pred_fallthru
      _
    // Predicated region
    $region26: #{block_forward.1} parent=1 // pred_check
      _
    $region27: #{block_forward.1} parent=1 // pred_check_branch
      %31 = sbr.rel (0) target = $region29
    $region28: #{block_forward.1} parent=1 // pred_region
      _
    $region29: #{block_forward.1} parent=1 // pred_fallthru
      _
    // Predicated region
    $region30: #{block_forward.1} parent=1 // pred_check
      _
    $region31: #{block_forward.1} parent=1 // pred_check_branch
      %33 = sbr.rel (0) target = $region33
    $region32: #{block_forward.1} parent=1 // pred_region
      _
    $region33: #{block_forward.1} parent=1 // pred_fallthru
      _
    // Predicated region
    $region34: #{block_forward.1} parent=1 // pred_check
      _
    $region35: #{block_forward.1} parent=1 // pred_check_branch
      %35 = sbr.rel (0) target = $region37
    $region36: #{block_forward.1} parent=1 // pred_region
      _
    $region37: #{block_forward.1} parent=1 // pred_fallthru
      _
    // Predicated region
    $region38: #{block_forward.1} parent=1 // pred_check
      _
    $region39: #{block_forward.1} parent=1 // pred_check_branch
      %37 = sbr.rel (0) target = $region41
    $region40: #{block_forward.1} parent=1 // pred_region
      _
    $region41: #{block_forward.1} parent=1 // pred_fallthru
      _
    // Predicated region
    $region42: #{block_forward.1} parent=1 // pred_check
      _
    $region43: #{block_forward.1} parent=1 // pred_check_branch
      %39 = sbr.rel (0) target = $region45
    $region44: #{block_forward.1} parent=1 // pred_region
      _
    $region45: #{block_forward.1} parent=1 // pred_fallthru
      _
    // Predicated region
    $region46: #{block_forward.1} parent=1 // pred_check
      _
    $region47: #{block_forward.1} parent=1 // pred_check_branch
      %41 = sbr.rel (0) target = $region49
    $region48: #{block_forward.1} parent=1 // pred_region
      _
    $region49: #{block_forward.1} parent=1 // pred_fallthru
      _
    %p42 = scmp.eq.s32.totalorder 0, 0
    // Predicated region
    $region50: #{block_forward.1} parent=1 // pred_check
      %p43 = pneg %p42
    $region51: #{block_forward.1} parent=1 // pred_check_branch
      %45 = sbr.rel (%p43) target = $region53
    $region52: #{block_forward.1} parent=1 // pred_region
      %v46 = vld [vmem:[%s0] sm:$0xff]
      %v47 = vld [vmem:[%s0 + $0x8] sm:$0xff]
      %v48 = vlaneseq
      %v49 = vand.u32 %v48, 127
      %50 = vset.pattern.permute.xlu0 0
      %51 = vperm.xlu0 %50, %v46
      %v52 = vpop.permute.xlu0 %51
      %53 = vset.pattern.permute.xlu0 0
      %54 = vperm.xlu0 %53, %v47
      %v55 = vpop.permute.xlu0 %54
      %vm56 = vcmp.eq.s32.totalorder %v52, %v49
      %vm57 = vcmp.eq.s32.totalorder %v55, %v49
      %v58 = vsel %vm56, 1, 0
      %v59 = vsel %vm57, 1, 0
      %v60 = vcvt.s32.f32 %v58
      %v61 = vcvt.s32.f32 %v59
      %v62 = vld [vmem:[%s1] sm:$0x3]
      %63 = vset.pattern.permute.xlu0 0
      %64 = vperm.xlu0 %63, %v62
      %v65 = vpop.permute.xlu0 %64
      %vm66 = vcmp.eq.s32.totalorder %v65, %v49
      %v67 = vsel %vm66, 1, 0
      %v68 = vcvt.s32.f32 %v67
      %v69 = vld [vmem:[%s3] sm:$0xff]
      %v70 = vld [vmem:[%s3 + $0x8] sm:$0xff]
      %v71 = vld [vmem:[%s3 + $0x10] sm:$0xff]
      %v72 = vld [vmem:[%s3 + $0x18] sm:$0xff]
      %v73 = vld [vmem:[%s3 + $0x20] sm:$0xff]
      %v74 = vld [vmem:[%s3 + $0x28] sm:$0xff]
      %v75 = vld [vmem:[%s3 + $0x30] sm:$0xff]
      %v76 = vld [vmem:[%s3 + $0x38] sm:$0xff]
      %v77 = vld [vmem:[%s3 + $0x40] sm:$0xff]
      %v78 = vld [vmem:[%s3 + $0x48] sm:$0xff]
      %v79 = vld [vmem:[%s3 + $0x50] sm:$0xff]
      %v80 = vld [vmem:[%s3 + $0x58] sm:$0xff]
      %v81 = vld [vmem:[%s3 + $0x60] sm:$0xff]
      %v82 = vld [vmem:[%s3 + $0x68] sm:$0xff]
      %v83 = vld [vmem:[%s3 + $0x70] sm:$0xff]
      %v84 = vld [vmem:[%s3 + $0x78] sm:$0xff]
      %v85 = vld [vmem:[%s3 + $0x80] sm:$0xff]
      %v86 = vld [vmem:[%s3 + $0x88] sm:$0xff]
      %v87 = vld [vmem:[%s3 + $0x90] sm:$0xff]
      %v88 = vld [vmem:[%s3 + $0x98] sm:$0xff]
      %v89 = vld [vmem:[%s3 + $0xa0] sm:$0xff]
      %v90 = vld [vmem:[%s3 + $0xa8] sm:$0xff]
      %v91 = vld [vmem:[%s3 + $0xb0] sm:$0xff]
      %v92 = vld [vmem:[%s3 + $0xb8] sm:$0xff]
      %v93 = vld [vmem:[%s3 + $0xc0] sm:$0xff]
      %v94 = vld [vmem:[%s3 + $0xc8] sm:$0xff]
      %v95 = vld [vmem:[%s3 + $0xd0] sm:$0xff]
      %v96 = vld [vmem:[%s3 + $0xd8] sm:$0xff]
      %v97 = vld [vmem:[%s3 + $0xe0] sm:$0xff]
      %v98 = vld [vmem:[%s3 + $0xe8] sm:$0xff]
      %v99 = vld [vmem:[%s3 + $0xf0] sm:$0xff]
      %v100 = vld [vmem:[%s3 + $0xf8] sm:$0xff]
      %v101 = vld [vmem:[%s3 + $0x100] sm:$0xff]
      %v102 = vld [vmem:[%s3 + $0x108] sm:$0xff]
      %v103 = vld [vmem:[%s3 + $0x110] sm:$0xff]
      %v104 = vld [vmem:[%s3 + $0x118] sm:$0xff]
      %v105 = vld [vmem:[%s3 + $0x120] sm:$0xff]
      %v106 = vld [vmem:[%s3 + $0x128] sm:$0xff]
      %v107 = vld [vmem:[%s3 + $0x130] sm:$0xff]
      %v108 = vld [vmem:[%s3 + $0x138] sm:$0xff]
      %v109 = vld [vmem:[%s3 + $0x140] sm:$0xff]
      %v110 = vld [vmem:[%s3 + $0x148] sm:$0xff]
      %v111 = vld [vmem:[%s3 + $0x150] sm:$0xff]
      %v112 = vld [vmem:[%s3 + $0x158] sm:$0xff]
      %v113 = vld [vmem:[%s3 + $0x160] sm:$0xff]
      %v114 = vld [vmem:[%s3 + $0x168] sm:$0xff]
      %v115 = vld [vmem:[%s3 + $0x170] sm:$0xff]
      %v116 = vld [vmem:[%s3 + $0x178] sm:$0xff]
      %117 = vmatpush.msra.mxu0 %v114
      %118 = vmatpush.msra.mxu0 %v111
      %119 = vmatpush.msra.mxu0 %v108
      %120 = vmatpush.msra.mxu0 %v105
      %121 = vmatpush.msra.mxu0 %v102
      %122 = vmatpush.msra.mxu0 %v99
      %123 = vmatpush.msra.mxu0 %v96
      %124 = vmatpush.msra.mxu0 %v93
      %125 = vmatpush.msra.mxu0 %v90
      %126 = vmatpush.msra.mxu0 %v87
      %127 = vmatpush.msra.mxu0 %v84
      %128 = vmatpush.msra.mxu0 %v81
      %129 = vmatpush.msra.mxu0 %v78
      %130 = vmatpush.msra.mxu0 %v75
      %131 = vmatpush.msra.mxu0 %v72
      %132 = vmatpush.msra.mxu0 %v69
      %133 = vmatmul.f32.gmra.mxu0 %v60
      %v134 = vpop.f32.mrf.mxu0
      %v135 = vadd.f32 0.0, %v134
      %136 = vmatmul.f32.gmra.mxu0 %v61
      %v137 = vpop.f32.mrf.mxu0
      %v138 = vadd.f32 0.0, %v137
      %139 = vdwg.mxu0
      %140 = vmatpush.msra.mxu0 %v115
      %141 = vmatpush.msra.mxu0 %v112
      %142 = vmatpush.msra.mxu0 %v109
      %143 = vmatpush.msra.mxu0 %v106
      %144 = vmatpush.msra.mxu0 %v103
      %145 = vmatpush.msra.mxu0 %v100
      %146 = vmatpush.msra.mxu0 %v97
      %147 = vmatpush.msra.mxu0 %v94
      %148 = vmatpush.msra.mxu0 %v91
      %149 = vmatpush.msra.mxu0 %v88
      %150 = vmatpush.msra.mxu0 %v85
      %151 = vmatpush.msra.mxu0 %v82
      %152 = vmatpush.msra.mxu0 %v79
      %153 = vmatpush.msra.mxu0 %v76
      %154 = vmatpush.msra.mxu0 %v73
      %155 = vmatpush.msra.mxu0 %v70
      %156 = vmatmul.f32.gmra.mxu0 %v60
      %v157 = vpop.f32.mrf.mxu0
      %v158 = vadd.f32 0.0, %v157
      %159 = vmatmul.f32.gmra.mxu0 %v61
      %v160 = vpop.f32.mrf.mxu0
      %v161 = vadd.f32 0.0, %v160
      %162 = vdwg.mxu0
      %163 = vmatpush.msra.mxu0 %v116
      %164 = vmatpush.msra.mxu0 %v113
      %165 = vmatpush.msra.mxu0 %v110
      %166 = vmatpush.msra.mxu0 %v107
      %167 = vmatpush.msra.mxu0 %v104
      %168 = vmatpush.msra.mxu0 %v101
      %169 = vmatpush.msra.mxu0 %v98
      %170 = vmatpush.msra.mxu0 %v95
      %171 = vmatpush.msra.mxu0 %v92
      %172 = vmatpush.msra.mxu0 %v89
      %173 = vmatpush.msra.mxu0 %v86
      %174 = vmatpush.msra.mxu0 %v83
      %175 = vmatpush.msra.mxu0 %v80
      %176 = vmatpush.msra.mxu0 %v77
      %177 = vmatpush.msra.mxu0 %v74
      %178 = vmatpush.msra.mxu0 %v71
      %179 = vmatmul.f32.gmra.mxu0 %v60
      %v180 = vpop.f32.mrf.mxu0
      %v181 = vadd.f32 0.0, %v180
      %182 = vmatmul.f32.gmra.mxu0 %v61
      %v183 = vpop.f32.mrf.mxu0
      %v184 = vadd.f32 0.0, %v183
      %185 = vdwg.mxu0
      %v186 = vld [vmem:[%s6] sm:$0xff]
      %v187 = vld [vmem:[%s6 + $0x8] sm:$0xff]
      %v188 = vld [vmem:[%s6 + $0x10] sm:$0xff]
      %v189 = vadd.f32 %v135, %v186
      %v190 = vadd.f32 %v158, %v187
      %v191 = vadd.f32 %v181, %v188
      %v192 = vadd.f32 %v138, %v186
      %v193 = vadd.f32 %v161, %v187
      %v194 = vadd.f32 %v184, %v188
      %v195 = vld [vmem:[%s5] sm:$0xff]
      %v196 = vld [vmem:[%s5 + $0x8] sm:$0xff]
      %v197 = vld [vmem:[%s5 + $0x10] sm:$0xff]
      %v198 = vld [vmem:[%s5 + $0x18] sm:$0xff]
      %v199 = vld [vmem:[%s5 + $0x20] sm:$0xff]
      %v200 = vld [vmem:[%s5 + $0x28] sm:$0xff]
      %v201 = vld [vmem:[%s5 + $0x30] sm:$0xff]
      %v202 = vld [vmem:[%s5 + $0x38] sm:$0xff]
      %v203 = vld [vmem:[%s5 + $0x40] sm:$0xff]
      %v204 = vld [vmem:[%s5 + $0x48] sm:$0xff]
      %v205 = vld [vmem:[%s5 + $0x50] sm:$0xff]
      %v206 = vld [vmem:[%s5 + $0x58] sm:$0xff]
      %v207 = vld [vmem:[%s5 + $0x60] sm:$0xff]
      %v208 = vld [vmem:[%s5 + $0x68] sm:$0xff]
      %v209 = vld [vmem:[%s5 + $0x70] sm:$0xff]
      %v210 = vld [vmem:[%s5 + $0x78] sm:$0xff]
      %v211 = vld [vmem:[%s5 + $0x80] sm:$0xff]
      %v212 = vld [vmem:[%s5 + $0x88] sm:$0xff]
      %v213 = vld [vmem:[%s5 + $0x90] sm:$0xff]
      %v214 = vld [vmem:[%s5 + $0x98] sm:$0xff]
      %v215 = vld [vmem:[%s5 + $0xa0] sm:$0xff]
      %v216 = vld [vmem:[%s5 + $0xa8] sm:$0xff]
      %v217 = vld [vmem:[%s5 + $0xb0] sm:$0xff]
      %v218 = vld [vmem:[%s5 + $0xb8] sm:$0xff]
      %v219 = vld [vmem:[%s5 + $0xc0] sm:$0xff]
      %v220 = vld [vmem:[%s5 + $0xc8] sm:$0xff]
      %v221 = vld [vmem:[%s5 + $0xd0] sm:$0xff]
      %v222 = vld [vmem:[%s5 + $0xd8] sm:$0xff]
      %v223 = vld [vmem:[%s5 + $0xe0] sm:$0xff]
      %v224 = vld [vmem:[%s5 + $0xe8] sm:$0xff]
      %v225 = vld [vmem:[%s5 + $0xf0] sm:$0xff]
      %v226 = vld [vmem:[%s5 + $0xf8] sm:$0xff]
      %v227 = vld [vmem:[%s5 + $0x100] sm:$0xff]
      %v228 = vld [vmem:[%s5 + $0x108] sm:$0xff]
      %v229 = vld [vmem:[%s5 + $0x110] sm:$0xff]
      %v230 = vld [vmem:[%s5 + $0x118] sm:$0xff]
      %v231 = vld [vmem:[%s5 + $0x120] sm:$0xff]
      %v232 = vld [vmem:[%s5 + $0x128] sm:$0xff]
      %v233 = vld [vmem:[%s5 + $0x130] sm:$0xff]
      %v234 = vld [vmem:[%s5 + $0x138] sm:$0xff]
      %v235 = vld [vmem:[%s5 + $0x140] sm:$0xff]
      %v236 = vld [vmem:[%s5 + $0x148] sm:$0xff]
      %v237 = vld [vmem:[%s5 + $0x150] sm:$0xff]
      %v238 = vld [vmem:[%s5 + $0x158] sm:$0xff]
      %v239 = vld [vmem:[%s5 + $0x160] sm:$0xff]
      %v240 = vld [vmem:[%s5 + $0x168] sm:$0xff]
      %v241 = vld [vmem:[%s5 + $0x170] sm:$0xff]
      %v242 = vld [vmem:[%s5 + $0x178] sm:$0xff]
      %243 = vmatpush.msra.mxu0 %v240
      %244 = vmatpush.msra.mxu0 %v237
      %245 = vmatpush.msra.mxu0 %v234
      %246 = vmatpush.msra.mxu0 %v231
      %247 = vmatpush.msra.mxu0 %v228
      %248 = vmatpush.msra.mxu0 %v225
      %249 = vmatpush.msra.mxu0 %v222
      %250 = vmatpush.msra.mxu0 %v219
      %251 = vmatpush.msra.mxu0 %v216
      %252 = vmatpush.msra.mxu0 %v213
      %253 = vmatpush.msra.mxu0 %v210
      %254 = vmatpush.msra.mxu0 %v207
      %255 = vmatpush.msra.mxu0 %v204
      %256 = vmatpush.msra.mxu0 %v201
      %257 = vmatpush.msra.mxu0 %v198
      %258 = vmatpush.msra.mxu0 %v195
      %259 = vmatmul.f32.gmra.mxu0 %v60
      %v260 = vpop.f32.mrf.mxu0
      %v261 = vadd.f32 0.0, %v260
      %262 = vmatmul.f32.gmra.mxu0 %v61
      %v263 = vpop.f32.mrf.mxu0
      %v264 = vadd.f32 0.0, %v263
      %265 = vdwg.mxu0
      %266 = vmatpush.msra.mxu0 %v241
      %267 = vmatpush.msra.mxu0 %v238
      %268 = vmatpush.msra.mxu0 %v235
      %269 = vmatpush.msra.mxu0 %v232
      %270 = vmatpush.msra.mxu0 %v229
      %271 = vmatpush.msra.mxu0 %v226
      %272 = vmatpush.msra.mxu0 %v223
      %273 = vmatpush.msra.mxu0 %v220
      %274 = vmatpush.msra.mxu0 %v217
      %275 = vmatpush.msra.mxu0 %v214
      %276 = vmatpush.msra.mxu0 %v211
      %277 = vmatpush.msra.mxu0 %v208
      %278 = vmatpush.msra.mxu0 %v205
      %279 = vmatpush.msra.mxu0 %v202
      %280 = vmatpush.msra.mxu0 %v199
      %281 = vmatpush.msra.mxu0 %v196
      %282 = vmatmul.f32.gmra.mxu0 %v60
      %v283 = vpop.f32.mrf.mxu0
      %v284 = vadd.f32 0.0, %v283
      %285 = vmatmul.f32.gmra.mxu0 %v61
      %v286 = vpop.f32.mrf.mxu0
      %v287 = vadd.f32 0.0, %v286
      %288 = vdwg.mxu0
      %289 = vmatpush.msra.mxu0 %v242
      %290 = vmatpush.msra.mxu0 %v239
      %291 = vmatpush.msra.mxu0 %v236
      %292 = vmatpush.msra.mxu0 %v233
      %293 = vmatpush.msra.mxu0 %v230
      %294 = vmatpush.msra.mxu0 %v227
      %295 = vmatpush.msra.mxu0 %v224
      %296 = vmatpush.msra.mxu0 %v221
      %297 = vmatpush.msra.mxu0 %v218
      %298 = vmatpush.msra.mxu0 %v215
      %299 = vmatpush.msra.mxu0 %v212
      %300 = vmatpush.msra.mxu0 %v209
      %301 = vmatpush.msra.mxu0 %v206
      %302 = vmatpush.msra.mxu0 %v203
      %303 = vmatpush.msra.mxu0 %v200
      %304 = vmatpush.msra.mxu0 %v197
      %305 = vmatmul.f32.gmra.mxu0 %v60
      %v306 = vpop.f32.mrf.mxu0
      %v307 = vadd.f32 0.0, %v306
      %308 = vmatmul.f32.gmra.mxu0 %v61
      %v309 = vpop.f32.mrf.mxu0
      %v310 = vadd.f32 0.0, %v309
      %311 = vdwg.mxu0
      %v312 = vld [vmem:[%s7] sm:$0xff]
      %v313 = vld [vmem:[%s7 + $0x8] sm:$0xff]
      %v314 = vld [vmem:[%s7 + $0x10] sm:$0xff]
      %v315 = vadd.f32 %v261, %v312
      %v316 = vadd.f32 %v284, %v313
      %v317 = vadd.f32 %v307, %v314
      %v318 = vadd.f32 %v264, %v312
      %v319 = vadd.f32 %v287, %v313
      %v320 = vadd.f32 %v310, %v314
      %v321 = vld [vmem:[%s4] sm:$0xff]
      %v322 = vld [vmem:[%s4 + $0x8] sm:$0xff]
      %v323 = vld [vmem:[%s4 + $0x10] sm:$0xff]
      %v324 = vld [vmem:[%s4 + $0x18] sm:$0xff]
      %v325 = vld [vmem:[%s4 + $0x20] sm:$0xff]
      %v326 = vld [vmem:[%s4 + $0x28] sm:$0xff]
      %v327 = vld [vmem:[%s4 + $0x30] sm:$0xff]
      %v328 = vld [vmem:[%s4 + $0x38] sm:$0xff]
      %v329 = vld [vmem:[%s4 + $0x40] sm:$0xff]
      %v330 = vld [vmem:[%s4 + $0x48] sm:$0xff]
      %v331 = vld [vmem:[%s4 + $0x50] sm:$0xff]
      %v332 = vld [vmem:[%s4 + $0x58] sm:$0xff]
      %v333 = vld [vmem:[%s4 + $0x60] sm:$0xff]
      %v334 = vld [vmem:[%s4 + $0x68] sm:$0xff]
      %v335 = vld [vmem:[%s4 + $0x70] sm:$0xff]
      %v336 = vld [vmem:[%s4 + $0x78] sm:$0xff]
      %v337 = vld [vmem:[%s4 + $0x80] sm:$0xff]
      %v338 = vld [vmem:[%s4 + $0x88] sm:$0xff]
      %v339 = vld [vmem:[%s4 + $0x90] sm:$0xff]
      %v340 = vld [vmem:[%s4 + $0x98] sm:$0xff]
      %v341 = vld [vmem:[%s4 + $0xa0] sm:$0xff]
      %v342 = vld [vmem:[%s4 + $0xa8] sm:$0xff]
      %v343 = vld [vmem:[%s4 + $0xb0] sm:$0xff]
      %v344 = vld [vmem:[%s4 + $0xb8] sm:$0xff]
      %v345 = vld [vmem:[%s4 + $0xc0] sm:$0xff]
      %v346 = vld [vmem:[%s4 + $0xc8] sm:$0xff]
      %v347 = vld [vmem:[%s4 + $0xd0] sm:$0xff]
      %v348 = vld [vmem:[%s4 + $0xd8] sm:$0xff]
      %v349 = vld [vmem:[%s4 + $0xe0] sm:$0xff]
      %v350 = vld [vmem:[%s4 + $0xe8] sm:$0xff]
      %v351 = vld [vmem:[%s4 + $0xf0] sm:$0xff]
      %v352 = vld [vmem:[%s4 + $0xf8] sm:$0xff]
      %v353 = vld [vmem:[%s4 + $0x100] sm:$0xff]
      %v354 = vld [vmem:[%s4 + $0x108] sm:$0xff]
      %v355 = vld [vmem:[%s4 + $0x110] sm:$0xff]
      %v356 = vld [vmem:[%s4 + $0x118] sm:$0xff]
      %v357 = vld [vmem:[%s4 + $0x120] sm:$0xff]
      %v358 = vld [vmem:[%s4 + $0x128] sm:$0xff]
      %v359 = vld [vmem:[%s4 + $0x130] sm:$0xff]
      %v360 = vld [vmem:[%s4 + $0x138] sm:$0xff]
      %v361 = vld [vmem:[%s4 + $0x140] sm:$0xff]
      %v362 = vld [vmem:[%s4 + $0x148] sm:$0xff]
      %v363 = vld [vmem:[%s4 + $0x150] sm:$0xff]
      %v364 = vld [vmem:[%s4 + $0x158] sm:$0xff]
      %v365 = vld [vmem:[%s4 + $0x160] sm:$0xff]
      %v366 = vld [vmem:[%s4 + $0x168] sm:$0xff]
      %v367 = vld [vmem:[%s4 + $0x170] sm:$0xff]
      %v368 = vld [vmem:[%s4 + $0x178] sm:$0xff]
      %369 = vmatpush.msra.mxu0 %v366
      %370 = vmatpush.msra.mxu0 %v363
      %371 = vmatpush.msra.mxu0 %v360
      %372 = vmatpush.msra.mxu0 %v357
      %373 = vmatpush.msra.mxu0 %v354
      %374 = vmatpush.msra.mxu0 %v351
      %375 = vmatpush.msra.mxu0 %v348
      %376 = vmatpush.msra.mxu0 %v345
      %377 = vmatpush.msra.mxu0 %v342
      %378 = vmatpush.msra.mxu0 %v339
      %379 = vmatpush.msra.mxu0 %v336
      %380 = vmatpush.msra.mxu0 %v333
      %381 = vmatpush.msra.mxu0 %v330
      %382 = vmatpush.msra.mxu0 %v327
      %383 = vmatpush.msra.mxu0 %v324
      %384 = vmatpush.msra.mxu0 %v321
      %385 = vmatmul.f32.gmra.mxu0 %v68
      %v386 = vpop.f32.mrf.mxu0
      %v387 = vadd.f32 0.0, %v386
      %388 = vdwg.mxu0
      %389 = vmatpush.msra.mxu0 %v367
      %390 = vmatpush.msra.mxu0 %v364
      %391 = vmatpush.msra.mxu0 %v361
      %392 = vmatpush.msra.mxu0 %v358
      %393 = vmatpush.msra.mxu0 %v355
      %394 = vmatpush.msra.mxu0 %v352
      %395 = vmatpush.msra.mxu0 %v349
      %396 = vmatpush.msra.mxu0 %v346
      %397 = vmatpush.msra.mxu0 %v343
      %398 = vmatpush.msra.mxu0 %v340
      %399 = vmatpush.msra.mxu0 %v337
      %400 = vmatpush.msra.mxu0 %v334
      %401 = vmatpush.msra.mxu0 %v331
      %402 = vmatpush.msra.mxu0 %v328
      %403 = vmatpush.msra.mxu0 %v325
      %404 = vmatpush.msra.mxu0 %v322
      %405 = vmatmul.f32.gmra.mxu0 %v68
      %v406 = vpop.f32.mrf.mxu0
      %v407 = vadd.f32 0.0, %v406
      %408 = vdwg.mxu0
      %409 = vmatpush.msra.mxu0 %v368
      %410 = vmatpush.msra.mxu0 %v365
      %411 = vmatpush.msra.mxu0 %v362
      %412 = vmatpush.msra.mxu0 %v359
      %413 = vmatpush.msra.mxu0 %v356
      %414 = vmatpush.msra.mxu0 %v353
      %415 = vmatpush.msra.mxu0 %v350
      %416 = vmatpush.msra.mxu0 %v347
      %417 = vmatpush.msra.mxu0 %v344
      %418 = vmatpush.msra.mxu0 %v341
      %419 = vmatpush.msra.mxu0 %v338
      %420 = vmatpush.msra.mxu0 %v335
      %421 = vmatpush.msra.mxu0 %v332
      %422 = vmatpush.msra.mxu0 %v329
      %423 = vmatpush.msra.mxu0 %v326
      %424 = vmatpush.msra.mxu0 %v323
      %425 = vmatmul.f32.gmra.mxu0 %v68
      %v426 = vpop.f32.mrf.mxu0
      %v427 = vadd.f32 0.0, %v426
      %428 = vdwg.mxu0
      %v432 = vrot.slane %v407, 7
      %v433 = vrot.slane %v427, 6
      %vm434 = vcmask 1040384
      %v435 = vsel %vm434, %v387, %v432
      %vm436 = vcmask 1041408
      %v437 = vsel %vm436, %v435, %v433
      %vm438 = vcmask 1041409
      %v439 = vsel %vm438, %v387, %v432
      %vm440 = vcmask 1042433
      %v441 = vsel %vm440, %v439, %v433
      %v442 = vrot.slane %v441, 1
      %v443 = vperm.slane %v437, 0
      %v444 = vperm.slane %v437, 1
      %v445 = vperm.slane %v437, 2
      %v446 = vperm.slane %v442, 0
      %v447 = vperm.slane %v442, 1
      %v448 = vperm.slane %v442, 2
      %v455 = vmul.f32 %v443, %v189
      %v456 = vmul.f32 %v444, %v190
      %v457 = vmul.f32 %v445, %v191
      %v458 = vmul.f32 %v446, %v192
      %v459 = vmul.f32 %v447, %v193
      %v460 = vmul.f32 %v448, %v194
      %v461 = vld [vmem:[%s8] sm:$0xff]
      %v462 = vld [vmem:[%s8 + $0x8] sm:$0xff]
      %v463 = vld [vmem:[%s8 + $0x10] sm:$0xff]
      %v464 = vld [vmem:[%s8 + $0x18] sm:$0xff]
      %v465 = vld [vmem:[%s8 + $0x20] sm:$0xff]
      %v466 = vld [vmem:[%s8 + $0x28] sm:$0xff]
      %v467 = vld [vmem:[%s8 + $0x30] sm:$0xff]
      %v468 = vld [vmem:[%s8 + $0x38] sm:$0xff]
      %v469 = vld [vmem:[%s8 + $0x40] sm:$0xff]
      %v470 = vld [vmem:[%s8 + $0x48] sm:$0xff]
      %v471 = vld [vmem:[%s8 + $0x50] sm:$0xff]
      %v472 = vld [vmem:[%s8 + $0x58] sm:$0xff]
      %v473 = vld [vmem:[%s8 + $0x60] sm:$0xff]
      %v474 = vld [vmem:[%s8 + $0x68] sm:$0xff]
      %v475 = vld [vmem:[%s8 + $0x70] sm:$0xff]
      %v476 = vld [vmem:[%s8 + $0x78] sm:$0xff]
      %v477 = vld [vmem:[%s8 + $0x80] sm:$0xff]
      %v478 = vld [vmem:[%s8 + $0x88] sm:$0xff]
      %v479 = vld [vmem:[%s8 + $0x90] sm:$0xff]
      %v480 = vld [vmem:[%s8 + $0x98] sm:$0xff]
      %v481 = vld [vmem:[%s8 + $0xa0] sm:$0xff]
      %v482 = vld [vmem:[%s8 + $0xa8] sm:$0xff]
      %v483 = vld [vmem:[%s8 + $0xb0] sm:$0xff]
      %v484 = vld [vmem:[%s8 + $0xb8] sm:$0xff]
      %v485 = vld [vmem:[%s8 + $0xc0] sm:$0xff]
      %v486 = vld [vmem:[%s8 + $0xc8] sm:$0xff]
      %v487 = vld [vmem:[%s8 + $0xd0] sm:$0xff]
      %v488 = vld [vmem:[%s8 + $0xd8] sm:$0xff]
      %v489 = vld [vmem:[%s8 + $0xe0] sm:$0xff]
      %v490 = vld [vmem:[%s8 + $0xe8] sm:$0xff]
      %v491 = vld [vmem:[%s8 + $0xf0] sm:$0xff]
      %v492 = vld [vmem:[%s8 + $0xf8] sm:$0xff]
      %v493 = vld [vmem:[%s8 + $0x100] sm:$0xff]
      %v494 = vld [vmem:[%s8 + $0x108] sm:$0xff]
      %v495 = vld [vmem:[%s8 + $0x110] sm:$0xff]
      %v496 = vld [vmem:[%s8 + $0x118] sm:$0xff]
      %v497 = vld [vmem:[%s8 + $0x120] sm:$0xff]
      %v498 = vld [vmem:[%s8 + $0x128] sm:$0xff]
      %v499 = vld [vmem:[%s8 + $0x130] sm:$0xff]
      %v500 = vld [vmem:[%s8 + $0x138] sm:$0xff]
      %v501 = vld [vmem:[%s8 + $0x140] sm:$0xff]
      %v502 = vld [vmem:[%s8 + $0x148] sm:$0xff]
      %v503 = vld [vmem:[%s8 + $0x150] sm:$0xff]
      %v504 = vld [vmem:[%s8 + $0x158] sm:$0xff]
      %v505 = vld [vmem:[%s8 + $0x160] sm:$0xff]
      %v506 = vld [vmem:[%s8 + $0x168] sm:$0xff]
      %v507 = vld [vmem:[%s8 + $0x170] sm:$0xff]
      %v508 = vld [vmem:[%s8 + $0x178] sm:$0xff]
      %509 = vmatpush.msra.mxu0 %v476
      %510 = vmatpush.msra.mxu0 %v475
      %511 = vmatpush.msra.mxu0 %v474
      %512 = vmatpush.msra.mxu0 %v473
      %513 = vmatpush.msra.mxu0 %v472
      %514 = vmatpush.msra.mxu0 %v471
      %515 = vmatpush.msra.mxu0 %v470
      %516 = vmatpush.msra.mxu0 %v469
      %517 = vmatpush.msra.mxu0 %v468
      %518 = vmatpush.msra.mxu0 %v467
      %519 = vmatpush.msra.mxu0 %v466
      %520 = vmatpush.msra.mxu0 %v465
      %521 = vmatpush.msra.mxu0 %v464
      %522 = vmatpush.msra.mxu0 %v463
      %523 = vmatpush.msra.mxu0 %v462
      %524 = vmatpush.msra.mxu0 %v461
      %525 = vmatmul.f32.gmra.mxu0 %v455
      %v526 = vpop.f32.mrf.mxu0
      %v527 = vadd.f32 0.0, %v526
      %528 = vmatmul.f32.gmra.mxu0 %v458
      %v529 = vpop.f32.mrf.mxu0
      %v530 = vadd.f32 0.0, %v529
      %531 = vdwg.mxu0
      %532 = vmatpush.msra.mxu0 %v492
      %533 = vmatpush.msra.mxu0 %v491
      %534 = vmatpush.msra.mxu0 %v490
      %535 = vmatpush.msra.mxu0 %v489
      %536 = vmatpush.msra.mxu0 %v488
      %537 = vmatpush.msra.mxu0 %v487
      %538 = vmatpush.msra.mxu0 %v486
      %539 = vmatpush.msra.mxu0 %v485
      %540 = vmatpush.msra.mxu0 %v484
      %541 = vmatpush.msra.mxu0 %v483
      %542 = vmatpush.msra.mxu0 %v482
      %543 = vmatpush.msra.mxu0 %v481
      %544 = vmatpush.msra.mxu0 %v480
      %545 = vmatpush.msra.mxu0 %v479
      %546 = vmatpush.msra.mxu0 %v478
      %547 = vmatpush.msra.mxu0 %v477
      %548 = vmatmul.f32.gmra.mxu0 %v456
      %v549 = vpop.f32.mrf.mxu0
      %v550 = vadd.f32 %v527, %v549
      %551 = vmatmul.f32.gmra.mxu0 %v459
      %v552 = vpop.f32.mrf.mxu0
      %v553 = vadd.f32 %v530, %v552
      %554 = vdwg.mxu0
      %555 = vmatpush.msra.mxu0 %v508
      %556 = vmatpush.msra.mxu0 %v507
      %557 = vmatpush.msra.mxu0 %v506
      %558 = vmatpush.msra.mxu0 %v505
      %559 = vmatpush.msra.mxu0 %v504
      %560 = vmatpush.msra.mxu0 %v503
      %561 = vmatpush.msra.mxu0 %v502
      %562 = vmatpush.msra.mxu0 %v501
      %563 = vmatpush.msra.mxu0 %v500
      %564 = vmatpush.msra.mxu0 %v499
      %565 = vmatpush.msra.mxu0 %v498
      %566 = vmatpush.msra.mxu0 %v497
      %567 = vmatpush.msra.mxu0 %v496
      %568 = vmatpush.msra.mxu0 %v495
      %569 = vmatpush.msra.mxu0 %v494
      %570 = vmatpush.msra.mxu0 %v493
      %571 = vmatmul.f32.gmra.mxu0 %v457
      %v572 = vpop.f32.mrf.mxu0
      %v573 = vadd.f32 %v550, %v572
      %574 = vmatmul.f32.gmra.mxu0 %v460
      %v575 = vpop.f32.mrf.mxu0
      %v576 = vadd.f32 %v553, %v575
      %577 = vdwg.mxu0
      %v578 = vrot.slane %v573, 4
      %v579 = vmax.f32 %v573, %v578
      %v580 = vrot.slane %v579, 2
      %v581 = vmax.f32 %v579, %v580
      %v582 = vrot.slane %v581, 1
      %v583 = vmax.f32 %v581, %v582
      %v584 = vrot.slane %v576, 4
      %v585 = vmax.f32 %v576, %v584
      %v586 = vrot.slane %v585, 2
      %v587 = vmax.f32 %v585, %v586
      %v588 = vrot.slane %v587, 1
      %v589 = vmax.f32 %v587, %v588
      %v590 = vsub.f32 %v573, %v583
      %v591 = vsub.f32 %v576, %v589
      %v592 = vmul.f32 %v590, 1.442695
      %v593 = vpow.pop %v592
      %v594 = vmul.f32 %v591, 1.442695
      %v595 = vpow.pop %v594
      %v596 = vrot.slane %v593, 4
      %v597 = vadd.f32 %v593, %v596
      %v598 = vrot.slane %v597, 2
      %v599 = vadd.f32 %v597, %v598
      %v600 = vrot.slane %v599, 1
      %v601 = vadd.f32 %v599, %v600
      %v602 = vrot.slane %v595, 4
      %v603 = vadd.f32 %v595, %v602
      %v604 = vrot.slane %v603, 2
      %v605 = vadd.f32 %v603, %v604
      %v606 = vrot.slane %v605, 1
      %v607 = vadd.f32 %v605, %v606
      %v608 = vrcp.pop %v601
      %v609 = vmul.f32 %v601, %v608
      %v610 = vsub.f32 1.0, %v609
      %v611 = vmul.f32 %v608, %v610
      %v612 = vadd.f32 %v608, %v611
      %vm613 = vweird.f32 %v601
      %vm614 = vweird.f32 %v608
      %vm615 = vmor %vm613, %vm614
      %v616 = vsel %vm615, %v608, %v612
      %v617 = vand.u32 2147483647, %v601
      %vm618 = vcmp.eq.f32.partialorder %v617, 8.507059e+37
      %v619 = vand.u32 %v601, 2147483648
      %v620 = vor.u32 1.1754944e-38, %v619
      %v621 = vsel %vm618, %v620, %v616
      %v622 = vmul.f32 %v593, %v621
      %v623 = vrcp.pop %v607
      %v624 = vmul.f32 %v607, %v623
      %v625 = vsub.f32 1.0, %v624
      %v626 = vmul.f32 %v623, %v625
      %v627 = vadd.f32 %v623, %v626
      %vm628 = vweird.f32 %v607
      %vm629 = vweird.f32 %v623
      %vm630 = vmor %vm628, %vm629
      %v631 = vsel %vm630, %v623, %v627
      %v632 = vand.u32 2147483647, %v607
      %vm633 = vcmp.eq.f32.partialorder %v632, 8.507059e+37
      %v634 = vand.u32 %v607, 2147483648
      %v635 = vor.u32 1.1754944e-38, %v634
      %v636 = vsel %vm633, %v635, %v631
      %v637 = vmul.f32 %v595, %v636
      %v638 = vld [vmem:[%s9] sm:$0xff]
      %v639 = vld [vmem:[%s9 + $0x8] sm:$0xff]
      %v640 = vld [vmem:[%s9 + $0x10] sm:$0xff]
      %v641 = vld [vmem:[%s9 + $0x18] sm:$0xff]
      %v642 = vld [vmem:[%s9 + $0x20] sm:$0xff]
      %v643 = vld [vmem:[%s9 + $0x28] sm:$0xff]
      %v644 = vld [vmem:[%s9 + $0x30] sm:$0xff]
      %v645 = vld [vmem:[%s9 + $0x38] sm:$0xff]
      %v646 = vld [vmem:[%s9 + $0x40] sm:$0xff]
      %v647 = vld [vmem:[%s9 + $0x48] sm:$0xff]
      %v648 = vld [vmem:[%s9 + $0x50] sm:$0xff]
      %v649 = vld [vmem:[%s9 + $0x58] sm:$0xff]
      %v650 = vld [vmem:[%s9 + $0x60] sm:$0xff]
      %v651 = vld [vmem:[%s9 + $0x68] sm:$0xff]
      %v652 = vld [vmem:[%s9 + $0x70] sm:$0xff]
      %v653 = vld [vmem:[%s9 + $0x78] sm:$0xff]
      %v654 = vld [vmem:[%s9 + $0x80] sm:$0xff]
      %v655 = vld [vmem:[%s9 + $0x88] sm:$0xff]
      %v656 = vld [vmem:[%s9 + $0x90] sm:$0xff]
      %v657 = vld [vmem:[%s9 + $0x98] sm:$0xff]
      %v658 = vld [vmem:[%s9 + $0xa0] sm:$0xff]
      %v659 = vld [vmem:[%s9 + $0xa8] sm:$0xff]
      %v660 = vld [vmem:[%s9 + $0xb0] sm:$0xff]
      %v661 = vld [vmem:[%s9 + $0xb8] sm:$0xff]
      %v662 = vld [vmem:[%s9 + $0xc0] sm:$0xff]
      %v663 = vld [vmem:[%s9 + $0xc8] sm:$0xff]
      %v664 = vld [vmem:[%s9 + $0xd0] sm:$0xff]
      %v665 = vld [vmem:[%s9 + $0xd8] sm:$0xff]
      %v666 = vld [vmem:[%s9 + $0xe0] sm:$0xff]
      %v667 = vld [vmem:[%s9 + $0xe8] sm:$0xff]
      %v668 = vld [vmem:[%s9 + $0xf0] sm:$0xff]
      %v669 = vld [vmem:[%s9 + $0xf8] sm:$0xff]
      %v670 = vld [vmem:[%s9 + $0x100] sm:$0xff]
      %v671 = vld [vmem:[%s9 + $0x108] sm:$0xff]
      %v672 = vld [vmem:[%s9 + $0x110] sm:$0xff]
      %v673 = vld [vmem:[%s9 + $0x118] sm:$0xff]
      %v674 = vld [vmem:[%s9 + $0x120] sm:$0xff]
      %v675 = vld [vmem:[%s9 + $0x128] sm:$0xff]
      %v676 = vld [vmem:[%s9 + $0x130] sm:$0xff]
      %v677 = vld [vmem:[%s9 + $0x138] sm:$0xff]
      %v678 = vld [vmem:[%s9 + $0x140] sm:$0xff]
      %v679 = vld [vmem:[%s9 + $0x148] sm:$0xff]
      %v680 = vld [vmem:[%s9 + $0x150] sm:$0xff]
      %v681 = vld [vmem:[%s9 + $0x158] sm:$0xff]
      %v682 = vld [vmem:[%s9 + $0x160] sm:$0xff]
      %v683 = vld [vmem:[%s9 + $0x168] sm:$0xff]
      %v684 = vld [vmem:[%s9 + $0x170] sm:$0xff]
      %v685 = vld [vmem:[%s9 + $0x178] sm:$0xff]
      %686 = vmatpush.msra.mxu0 %v683
      %687 = vmatpush.msra.mxu0 %v680
      %688 = vmatpush.msra.mxu0 %v677
      %689 = vmatpush.msra.mxu0 %v674
      %690 = vmatpush.msra.mxu0 %v671
      %691 = vmatpush.msra.mxu0 %v668
      %692 = vmatpush.msra.mxu0 %v665
      %693 = vmatpush.msra.mxu0 %v662
      %694 = vmatpush.msra.mxu0 %v659
      %695 = vmatpush.msra.mxu0 %v656
      %696 = vmatpush.msra.mxu0 %v653
      %697 = vmatpush.msra.mxu0 %v650
      %698 = vmatpush.msra.mxu0 %v647
      %699 = vmatpush.msra.mxu0 %v644
      %700 = vmatpush.msra.mxu0 %v641
      %701 = vmatpush.msra.mxu0 %v638
      %702 = vmatmul.f32.gmra.mxu0 %v622
      %v703 = vpop.f32.mrf.mxu0
      %v704 = vadd.f32 0.0, %v703
      %705 = vmatmul.f32.gmra.mxu0 %v637
      %v706 = vpop.f32.mrf.mxu0
      %v707 = vadd.f32 0.0, %v706
      %708 = vdwg.mxu0
      %709 = vmatpush.msra.mxu0 %v684
      %710 = vmatpush.msra.mxu0 %v681
      %711 = vmatpush.msra.mxu0 %v678
      %712 = vmatpush.msra.mxu0 %v675
      %713 = vmatpush.msra.mxu0 %v672
      %714 = vmatpush.msra.mxu0 %v669
      %715 = vmatpush.msra.mxu0 %v666
      %716 = vmatpush.msra.mxu0 %v663
      %717 = vmatpush.msra.mxu0 %v660
      %718 = vmatpush.msra.mxu0 %v657
      %719 = vmatpush.msra.mxu0 %v654
      %720 = vmatpush.msra.mxu0 %v651
      %721 = vmatpush.msra.mxu0 %v648
      %722 = vmatpush.msra.mxu0 %v645
      %723 = vmatpush.msra.mxu0 %v642
      %724 = vmatpush.msra.mxu0 %v639
      %725 = vmatmul.f32.gmra.mxu0 %v622
      %v726 = vpop.f32.mrf.mxu0
      %v727 = vadd.f32 0.0, %v726
      %728 = vmatmul.f32.gmra.mxu0 %v637
      %v729 = vpop.f32.mrf.mxu0
      %v730 = vadd.f32 0.0, %v729
      %731 = vdwg.mxu0
      %732 = vmatpush.msra.mxu0 %v685
      %733 = vmatpush.msra.mxu0 %v682
      %734 = vmatpush.msra.mxu0 %v679
      %735 = vmatpush.msra.mxu0 %v676
      %736 = vmatpush.msra.mxu0 %v673
      %737 = vmatpush.msra.mxu0 %v670
      %738 = vmatpush.msra.mxu0 %v667
      %739 = vmatpush.msra.mxu0 %v664
      %740 = vmatpush.msra.mxu0 %v661
      %741 = vmatpush.msra.mxu0 %v658
      %742 = vmatpush.msra.mxu0 %v655
      %743 = vmatpush.msra.mxu0 %v652
      %744 = vmatpush.msra.mxu0 %v649
      %745 = vmatpush.msra.mxu0 %v646
      %746 = vmatpush.msra.mxu0 %v643
      %747 = vmatpush.msra.mxu0 %v640
      %748 = vmatmul.f32.gmra.mxu0 %v622
      %v749 = vpop.f32.mrf.mxu0
      %v750 = vadd.f32 0.0, %v749
      %751 = vmatmul.f32.gmra.mxu0 %v637
      %v752 = vpop.f32.mrf.mxu0
      %v753 = vadd.f32 0.0, %v752
      %754 = vdwg.mxu0
      %v755 = vmul.f32 %v704, %v315
      %v756 = vmul.f32 %v727, %v316
      %v757 = vmul.f32 %v750, %v317
      %v758 = vmul.f32 %v707, %v318
      %v759 = vmul.f32 %v730, %v319
      %v760 = vmul.f32 %v753, %v320
      %v761 = vrot.slane %v755, 4
      %v762 = vadd.f32 %v755, %v761
      %v763 = vrot.slane %v762, 2
      %v764 = vadd.f32 %v762, %v763
      %v765 = vrot.slane %v764, 1
      %v766 = vadd.f32 %v764, %v765
      %v767 = vrot.slane %v756, 4
      %v768 = vadd.f32 %v756, %v767
      %v769 = vrot.slane %v768, 2
      %v770 = vadd.f32 %v768, %v769
      %v771 = vrot.slane %v770, 1
      %v772 = vadd.f32 %v770, %v771
      %v773 = vrot.slane %v757, 4
      %v774 = vadd.f32 %v757, %v773
      %v775 = vrot.slane %v774, 2
      %v776 = vadd.f32 %v774, %v775
      %v777 = vrot.slane %v776, 1
      %v778 = vadd.f32 %v776, %v777
      %v779 = vrot.slane %v758, 4
      %v780 = vadd.f32 %v758, %v779
      %v781 = vrot.slane %v780, 2
      %v782 = vadd.f32 %v780, %v781
      %v783 = vrot.slane %v782, 1
      %v784 = vadd.f32 %v782, %v783
      %v785 = vrot.slane %v759, 4
      %v786 = vadd.f32 %v759, %v785
      %v787 = vrot.slane %v786, 2
      %v788 = vadd.f32 %v786, %v787
      %v789 = vrot.slane %v788, 1
      %v790 = vadd.f32 %v788, %v789
      %v791 = vrot.slane %v760, 4
      %v792 = vadd.f32 %v760, %v791
      %v793 = vrot.slane %v792, 2
      %v794 = vadd.f32 %v792, %v793
      %v795 = vrot.slane %v794, 1
      %v796 = vadd.f32 %v794, %v795
      %v797 = vld [vmem:[%s10] sm:$0xff]
      %v798 = vld [vmem:[%s10 + $0x8] sm:$0xff]
      %v799 = vld [vmem:[%s10 + $0x10] sm:$0xff]
      %v800 = vld [vmem:[%s10 + $0x18] sm:$0xff]
      %v801 = vld [vmem:[%s10 + $0x20] sm:$0xff]
      %v802 = vld [vmem:[%s10 + $0x28] sm:$0xff]
      %v803 = vld [vmem:[%s10 + $0x30] sm:$0xff]
      %v804 = vld [vmem:[%s10 + $0x38] sm:$0xff]
      %v805 = vld [vmem:[%s10 + $0x40] sm:$0xff]
      %v806 = vld [vmem:[%s10 + $0x48] sm:$0xff]
      %v807 = vld [vmem:[%s10 + $0x50] sm:$0xff]
      %v808 = vld [vmem:[%s10 + $0x58] sm:$0xff]
      %v809 = vld [vmem:[%s10 + $0x60] sm:$0xff]
      %v810 = vld [vmem:[%s10 + $0x68] sm:$0xff]
      %v811 = vld [vmem:[%s10 + $0x70] sm:$0xff]
      %v812 = vld [vmem:[%s10 + $0x78] sm:$0xff]
      %v813 = vld [vmem:[%s10 + $0x80] sm:$0xff]
      %v814 = vld [vmem:[%s10 + $0x88] sm:$0xff]
      %v815 = vld [vmem:[%s10 + $0x90] sm:$0xff]
      %v816 = vld [vmem:[%s10 + $0x98] sm:$0xff]
      %v817 = vld [vmem:[%s10 + $0xa0] sm:$0xff]
      %v818 = vld [vmem:[%s10 + $0xa8] sm:$0xff]
      %v819 = vld [vmem:[%s10 + $0xb0] sm:$0xff]
      %v820 = vld [vmem:[%s10 + $0xb8] sm:$0xff]
      %v821 = vld [vmem:[%s10 + $0xc0] sm:$0xff]
      %v822 = vld [vmem:[%s10 + $0xc8] sm:$0xff]
      %v823 = vld [vmem:[%s10 + $0xd0] sm:$0xff]
      %v824 = vld [vmem:[%s10 + $0xd8] sm:$0xff]
      %v825 = vld [vmem:[%s10 + $0xe0] sm:$0xff]
      %v826 = vld [vmem:[%s10 + $0xe8] sm:$0xff]
      %v827 = vld [vmem:[%s10 + $0xf0] sm:$0xff]
      %v828 = vld [vmem:[%s10 + $0xf8] sm:$0xff]
      %v829 = vld [vmem:[%s10 + $0x100] sm:$0xff]
      %v830 = vld [vmem:[%s10 + $0x108] sm:$0xff]
      %v831 = vld [vmem:[%s10 + $0x110] sm:$0xff]
      %v832 = vld [vmem:[%s10 + $0x118] sm:$0xff]
      %v833 = vld [vmem:[%s10 + $0x120] sm:$0xff]
      %v834 = vld [vmem:[%s10 + $0x128] sm:$0xff]
      %v835 = vld [vmem:[%s10 + $0x130] sm:$0xff]
      %v836 = vld [vmem:[%s10 + $0x138] sm:$0xff]
      %v837 = vld [vmem:[%s10 + $0x140] sm:$0xff]
      %v838 = vld [vmem:[%s10 + $0x148] sm:$0xff]
      %v839 = vld [vmem:[%s10 + $0x150] sm:$0xff]
      %v840 = vld [vmem:[%s10 + $0x158] sm:$0xff]
      %v841 = vld [vmem:[%s10 + $0x160] sm:$0xff]
      %v842 = vld [vmem:[%s10 + $0x168] sm:$0xff]
      %v843 = vld [vmem:[%s10 + $0x170] sm:$0xff]
      %v844 = vld [vmem:[%s10 + $0x178] sm:$0xff]
      %v845 = vld [vmem:[%s10 + $0x180] sm:$0xff]
      %v846 = vld [vmem:[%s10 + $0x188] sm:$0xff]
      %v847 = vld [vmem:[%s10 + $0x190] sm:$0xff]
      %v848 = vld [vmem:[%s10 + $0x198] sm:$0xff]
      %v849 = vld [vmem:[%s10 + $0x1a0] sm:$0xff]
      %v850 = vld [vmem:[%s10 + $0x1a8] sm:$0xff]
      %v851 = vld [vmem:[%s10 + $0x1b0] sm:$0xff]
      %v852 = vld [vmem:[%s10 + $0x1b8] sm:$0xff]
      %v853 = vld [vmem:[%s10 + $0x1c0] sm:$0xff]
      %v854 = vld [vmem:[%s10 + $0x1c8] sm:$0xff]
      %v855 = vld [vmem:[%s10 + $0x1d0] sm:$0xff]
      %v856 = vld [vmem:[%s10 + $0x1d8] sm:$0xff]
      %v857 = vld [vmem:[%s10 + $0x1e0] sm:$0xff]
      %v858 = vld [vmem:[%s10 + $0x1e8] sm:$0xff]
      %v859 = vld [vmem:[%s10 + $0x1f0] sm:$0xff]
      %v860 = vld [vmem:[%s10 + $0x1f8] sm:$0xff]
      %v861 = vld [vmem:[%s10 + $0x200] sm:$0xff]
      %v862 = vld [vmem:[%s10 + $0x208] sm:$0xff]
      %v863 = vld [vmem:[%s10 + $0x210] sm:$0xff]
      %v864 = vld [vmem:[%s10 + $0x218] sm:$0xff]
      %v865 = vld [vmem:[%s10 + $0x220] sm:$0xff]
      %v866 = vld [vmem:[%s10 + $0x228] sm:$0xff]
      %v867 = vld [vmem:[%s10 + $0x230] sm:$0xff]
      %v868 = vld [vmem:[%s10 + $0x238] sm:$0xff]
      %v869 = vld [vmem:[%s10 + $0x240] sm:$0xff]
      %v870 = vld [vmem:[%s10 + $0x248] sm:$0xff]
      %v871 = vld [vmem:[%s10 + $0x250] sm:$0xff]
      %v872 = vld [vmem:[%s10 + $0x258] sm:$0xff]
      %v873 = vld [vmem:[%s10 + $0x260] sm:$0xff]
      %v874 = vld [vmem:[%s10 + $0x268] sm:$0xff]
      %v875 = vld [vmem:[%s10 + $0x270] sm:$0xff]
      %v876 = vld [vmem:[%s10 + $0x278] sm:$0xff]
      %v877 = vld [vmem:[%s10 + $0x280] sm:$0xff]
      %v878 = vld [vmem:[%s10 + $0x288] sm:$0xff]
      %v879 = vld [vmem:[%s10 + $0x290] sm:$0xff]
      %v880 = vld [vmem:[%s10 + $0x298] sm:$0xff]
      %v881 = vld [vmem:[%s10 + $0x2a0] sm:$0xff]
      %v882 = vld [vmem:[%s10 + $0x2a8] sm:$0xff]
      %v883 = vld [vmem:[%s10 + $0x2b0] sm:$0xff]
      %v884 = vld [vmem:[%s10 + $0x2b8] sm:$0xff]
      %v885 = vld [vmem:[%s10 + $0x2c0] sm:$0xff]
      %v886 = vld [vmem:[%s10 + $0x2c8] sm:$0xff]
      %v887 = vld [vmem:[%s10 + $0x2d0] sm:$0xff]
      %v888 = vld [vmem:[%s10 + $0x2d8] sm:$0xff]
      %v889 = vld [vmem:[%s10 + $0x2e0] sm:$0xff]
      %v890 = vld [vmem:[%s10 + $0x2e8] sm:$0xff]
      %v891 = vld [vmem:[%s10 + $0x2f0] sm:$0xff]
      %v892 = vld [vmem:[%s10 + $0x2f8] sm:$0xff]
      %v893 = vld [vmem:[%s10 + $0x300] sm:$0xff]
      %v894 = vld [vmem:[%s10 + $0x308] sm:$0xff]
      %v895 = vld [vmem:[%s10 + $0x310] sm:$0xff]
      %v896 = vld [vmem:[%s10 + $0x318] sm:$0xff]
      %v897 = vld [vmem:[%s10 + $0x320] sm:$0xff]
      %v898 = vld [vmem:[%s10 + $0x328] sm:$0xff]
      %v899 = vld [vmem:[%s10 + $0x330] sm:$0xff]
      %v900 = vld [vmem:[%s10 + $0x338] sm:$0xff]
      %v901 = vld [vmem:[%s10 + $0x340] sm:$0xff]
      %v902 = vld [vmem:[%s10 + $0x348] sm:$0xff]
      %v903 = vld [vmem:[%s10 + $0x350] sm:$0xff]
      %v904 = vld [vmem:[%s10 + $0x358] sm:$0xff]
      %v905 = vld [vmem:[%s10 + $0x360] sm:$0xff]
      %v906 = vld [vmem:[%s10 + $0x368] sm:$0xff]
      %v907 = vld [vmem:[%s10 + $0x370] sm:$0xff]
      %v908 = vld [vmem:[%s10 + $0x378] sm:$0xff]
      %v909 = vld [vmem:[%s10 + $0x380] sm:$0xff]
      %v910 = vld [vmem:[%s10 + $0x388] sm:$0xff]
      %v911 = vld [vmem:[%s10 + $0x390] sm:$0xff]
      %v912 = vld [vmem:[%s10 + $0x398] sm:$0xff]
      %v913 = vld [vmem:[%s10 + $0x3a0] sm:$0xff]
      %v914 = vld [vmem:[%s10 + $0x3a8] sm:$0xff]
      %v915 = vld [vmem:[%s10 + $0x3b0] sm:$0xff]
      %v916 = vld [vmem:[%s10 + $0x3b8] sm:$0xff]
      %v917 = vld [vmem:[%s10 + $0x3c0] sm:$0xff]
      %v918 = vld [vmem:[%s10 + $0x3c8] sm:$0xff]
      %v919 = vld [vmem:[%s10 + $0x3d0] sm:$0xff]
      %v920 = vld [vmem:[%s10 + $0x3d8] sm:$0xff]
      %v921 = vld [vmem:[%s10 + $0x3e0] sm:$0xff]
      %v922 = vld [vmem:[%s10 + $0x3e8] sm:$0xff]
      %v923 = vld [vmem:[%s10 + $0x3f0] sm:$0xff]
      %v924 = vld [vmem:[%s10 + $0x3f8] sm:$0xff]
      %v925 = vld [vmem:[%s10 + $0x400] sm:$0xff]
      %v926 = vld [vmem:[%s10 + $0x408] sm:$0xff]
      %v927 = vld [vmem:[%s10 + $0x410] sm:$0xff]
      %v928 = vld [vmem:[%s10 + $0x418] sm:$0xff]
      %v929 = vld [vmem:[%s10 + $0x420] sm:$0xff]
      %v930 = vld [vmem:[%s10 + $0x428] sm:$0xff]
      %v931 = vld [vmem:[%s10 + $0x430] sm:$0xff]
      %v932 = vld [vmem:[%s10 + $0x438] sm:$0xff]
      %v933 = vld [vmem:[%s10 + $0x440] sm:$0xff]
      %v934 = vld [vmem:[%s10 + $0x448] sm:$0xff]
      %v935 = vld [vmem:[%s10 + $0x450] sm:$0xff]
      %v936 = vld [vmem:[%s10 + $0x458] sm:$0xff]
      %v937 = vld [vmem:[%s10 + $0x460] sm:$0xff]
      %v938 = vld [vmem:[%s10 + $0x468] sm:$0xff]
      %v939 = vld [vmem:[%s10 + $0x470] sm:$0xff]
      %v940 = vld [vmem:[%s10 + $0x478] sm:$0xff]
      %v941 = vld [vmem:[%s11] sm:$0x7]
      %v943 = vperm.slane %v941, 0
      %v944 = vperm.slane %v941, 1
      %v945 = vperm.slane %v941, 2
      %v955 = vsel %vm438, %v784, %v766
      %v956 = vsel %vm438, %v790, %v772
      %v957 = vsel %vm438, %v796, %v778
      %961 = vmatpush.msra.mxu0 %v842
      %962 = vmatpush.msra.mxu0 %v839
      %963 = vmatpush.msra.mxu0 %v836
      %964 = vmatpush.msra.mxu0 %v833
      %965 = vmatpush.msra.mxu0 %v830
      %966 = vmatpush.msra.mxu0 %v827
      %967 = vmatpush.msra.mxu0 %v824
      %968 = vmatpush.msra.mxu0 %v821
      %969 = vmatpush.msra.mxu0 %v818
      %970 = vmatpush.msra.mxu0 %v815
      %971 = vmatpush.msra.mxu0 %v812
      %972 = vmatpush.msra.mxu0 %v809
      %973 = vmatpush.msra.mxu0 %v806
      %974 = vmatpush.msra.mxu0 %v803
      %975 = vmatpush.msra.mxu0 %v800
      %976 = vmatpush.msra.mxu0 %v797
      %977 = vmatmul.f32.gmra.mxu0 %v955
      %v978 = vpop.f32.mrf.mxu0
      %v979 = vadd.f32 %v943, %v978
      %980 = vdwg.mxu0
      %981 = vmatpush.msra.mxu0 %v890
      %982 = vmatpush.msra.mxu0 %v887
      %983 = vmatpush.msra.mxu0 %v884
      %984 = vmatpush.msra.mxu0 %v881
      %985 = vmatpush.msra.mxu0 %v878
      %986 = vmatpush.msra.mxu0 %v875
      %987 = vmatpush.msra.mxu0 %v872
      %988 = vmatpush.msra.mxu0 %v869
      %989 = vmatpush.msra.mxu0 %v866
      %990 = vmatpush.msra.mxu0 %v863
      %991 = vmatpush.msra.mxu0 %v860
      %992 = vmatpush.msra.mxu0 %v857
      %993 = vmatpush.msra.mxu0 %v854
      %994 = vmatpush.msra.mxu0 %v851
      %995 = vmatpush.msra.mxu0 %v848
      %996 = vmatpush.msra.mxu0 %v845
      %997 = vmatmul.f32.gmra.mxu0 %v956
      %v998 = vpop.f32.mrf.mxu0
      %v999 = vadd.f32 %v979, %v998
      %1000 = vdwg.mxu0
      %1001 = vmatpush.msra.mxu0 %v938
      %1002 = vmatpush.msra.mxu0 %v935
      %1003 = vmatpush.msra.mxu0 %v932
      %1004 = vmatpush.msra.mxu0 %v929
      %1005 = vmatpush.msra.mxu0 %v926
      %1006 = vmatpush.msra.mxu0 %v923
      %1007 = vmatpush.msra.mxu0 %v920
      %1008 = vmatpush.msra.mxu0 %v917
      %1009 = vmatpush.msra.mxu0 %v914
      %1010 = vmatpush.msra.mxu0 %v911
      %1011 = vmatpush.msra.mxu0 %v908
      %1012 = vmatpush.msra.mxu0 %v905
      %1013 = vmatpush.msra.mxu0 %v902
      %1014 = vmatpush.msra.mxu0 %v899
      %1015 = vmatpush.msra.mxu0 %v896
      %1016 = vmatpush.msra.mxu0 %v893
      %1017 = vmatmul.f32.gmra.mxu0 %v957
      %v1018 = vpop.f32.mrf.mxu0
      %v1019 = vadd.f32 %v999, %v1018
      %1020 = vdwg.mxu0
      %1021 = vmatpush.msra.mxu0 %v843
      %1022 = vmatpush.msra.mxu0 %v840
      %1023 = vmatpush.msra.mxu0 %v837
      %1024 = vmatpush.msra.mxu0 %v834
      %1025 = vmatpush.msra.mxu0 %v831
      %1026 = vmatpush.msra.mxu0 %v828
      %1027 = vmatpush.msra.mxu0 %v825
      %1028 = vmatpush.msra.mxu0 %v822
      %1029 = vmatpush.msra.mxu0 %v819
      %1030 = vmatpush.msra.mxu0 %v816
      %1031 = vmatpush.msra.mxu0 %v813
      %1032 = vmatpush.msra.mxu0 %v810
      %1033 = vmatpush.msra.mxu0 %v807
      %1034 = vmatpush.msra.mxu0 %v804
      %1035 = vmatpush.msra.mxu0 %v801
      %1036 = vmatpush.msra.mxu0 %v798
      %1037 = vmatmul.f32.gmra.mxu0 %v955
      %v1038 = vpop.f32.mrf.mxu0
      %v1039 = vadd.f32 %v944, %v1038
      %1040 = vdwg.mxu0
      %1041 = vmatpush.msra.mxu0 %v891
      %1042 = vmatpush.msra.mxu0 %v888
      %1043 = vmatpush.msra.mxu0 %v885
      %1044 = vmatpush.msra.mxu0 %v882
      %1045 = vmatpush.msra.mxu0 %v879
      %1046 = vmatpush.msra.mxu0 %v876
      %1047 = vmatpush.msra.mxu0 %v873
      %1048 = vmatpush.msra.mxu0 %v870
      %1049 = vmatpush.msra.mxu0 %v867
      %1050 = vmatpush.msra.mxu0 %v864
      %1051 = vmatpush.msra.mxu0 %v861
      %1052 = vmatpush.msra.mxu0 %v858
      %1053 = vmatpush.msra.mxu0 %v855
      %1054 = vmatpush.msra.mxu0 %v852
      %1055 = vmatpush.msra.mxu0 %v849
      %1056 = vmatpush.msra.mxu0 %v846
      %1057 = vmatmul.f32.gmra.mxu0 %v956
      %v1058 = vpop.f32.mrf.mxu0
      %v1059 = vadd.f32 %v1039, %v1058
      %1060 = vdwg.mxu0
      %1061 = vmatpush.msra.mxu0 %v939
      %1062 = vmatpush.msra.mxu0 %v936
      %1063 = vmatpush.msra.mxu0 %v933
      %1064 = vmatpush.msra.mxu0 %v930
      %1065 = vmatpush.msra.mxu0 %v927
      %1066 = vmatpush.msra.mxu0 %v924
      %1067 = vmatpush.msra.mxu0 %v921
      %1068 = vmatpush.msra.mxu0 %v918
      %1069 = vmatpush.msra.mxu0 %v915
      %1070 = vmatpush.msra.mxu0 %v912
      %1071 = vmatpush.msra.mxu0 %v909
      %1072 = vmatpush.msra.mxu0 %v906
      %1073 = vmatpush.msra.mxu0 %v903
      %1074 = vmatpush.msra.mxu0 %v900
      %1075 = vmatpush.msra.mxu0 %v897
      %1076 = vmatpush.msra.mxu0 %v894
      %1077 = vmatmul.f32.gmra.mxu0 %v957
      %v1078 = vpop.f32.mrf.mxu0
      %v1079 = vadd.f32 %v1059, %v1078
      %1080 = vdwg.mxu0
      %1081 = vmatpush.msra.mxu0 %v844
      %1082 = vmatpush.msra.mxu0 %v841
      %1083 = vmatpush.msra.mxu0 %v838
      %1084 = vmatpush.msra.mxu0 %v835
      %1085 = vmatpush.msra.mxu0 %v832
      %1086 = vmatpush.msra.mxu0 %v829
      %1087 = vmatpush.msra.mxu0 %v826
      %1088 = vmatpush.msra.mxu0 %v823
      %1089 = vmatpush.msra.mxu0 %v820
      %1090 = vmatpush.msra.mxu0 %v817
      %1091 = vmatpush.msra.mxu0 %v814
      %1092 = vmatpush.msra.mxu0 %v811
      %1093 = vmatpush.msra.mxu0 %v808
      %1094 = vmatpush.msra.mxu0 %v805
      %1095 = vmatpush.msra.mxu0 %v802
      %1096 = vmatpush.msra.mxu0 %v799
      %1097 = vmatmul.f32.gmra.mxu0 %v955
      %v1098 = vpop.f32.mrf.mxu0
      %v1099 = vadd.f32 %v945, %v1098
      %1100 = vdwg.mxu0
      %1101 = vmatpush.msra.mxu0 %v892
      %1102 = vmatpush.msra.mxu0 %v889
      %1103 = vmatpush.msra.mxu0 %v886
      %1104 = vmatpush.msra.mxu0 %v883
      %1105 = vmatpush.msra.mxu0 %v880
      %1106 = vmatpush.msra.mxu0 %v877
      %1107 = vmatpush.msra.mxu0 %v874
      %1108 = vmatpush.msra.mxu0 %v871
      %1109 = vmatpush.msra.mxu0 %v868
      %1110 = vmatpush.msra.mxu0 %v865
      %1111 = vmatpush.msra.mxu0 %v862
      %1112 = vmatpush.msra.mxu0 %v859
      %1113 = vmatpush.msra.mxu0 %v856
      %1114 = vmatpush.msra.mxu0 %v853
      %1115 = vmatpush.msra.mxu0 %v850
      %1116 = vmatpush.msra.mxu0 %v847
      %1117 = vmatmul.f32.gmra.mxu0 %v956
      %v1118 = vpop.f32.mrf.mxu0
      %v1119 = vadd.f32 %v1099, %v1118
      %1120 = vdwg.mxu0
      %1121 = vmatpush.msra.mxu0 %v940
      %1122 = vmatpush.msra.mxu0 %v937
      %1123 = vmatpush.msra.mxu0 %v934
      %1124 = vmatpush.msra.mxu0 %v931
      %1125 = vmatpush.msra.mxu0 %v928
      %1126 = vmatpush.msra.mxu0 %v925
      %1127 = vmatpush.msra.mxu0 %v922
      %1128 = vmatpush.msra.mxu0 %v919
      %1129 = vmatpush.msra.mxu0 %v916
      %1130 = vmatpush.msra.mxu0 %v913
      %1131 = vmatpush.msra.mxu0 %v910
      %1132 = vmatpush.msra.mxu0 %v907
      %1133 = vmatpush.msra.mxu0 %v904
      %1134 = vmatpush.msra.mxu0 %v901
      %1135 = vmatpush.msra.mxu0 %v898
      %1136 = vmatpush.msra.mxu0 %v895
      %1137 = vmatmul.f32.gmra.mxu0 %v957
      %v1138 = vpop.f32.mrf.mxu0
      %v1139 = vadd.f32 %v1119, %v1138
      %1140 = vdwg.mxu0
      %v1144 = vrot.slane %v1079, 6
      %v1145 = vrot.slane %v1139, 4
      %v1146 = vsel %vm436, %v1019, %v1144
      %vm1147 = vcmask 1043456
      %v1148 = vsel %vm1147, %v1146, %v1145
      %1150 = vst [vmem:[#allocation2] sm:$0x3f] %v1148
    $region53: #{block_forward.1} parent=1 // pred_fallthru
      _
    %v1151 = vld [vmem:[%s2] sm:$0xff]
    %v1152 = vld [vmem:[%s2 + $0x8] sm:$0xff]
    %v1153 = vld [vmem:[%s2 + $0x10] sm:$0xff]
    %v1154 = vld [vmem:[%s2 + $0x18] sm:$0xff]
    %v1155 = vld [vmem:[%s2 + $0x20] sm:$0xff]
    %v1156 = vld [vmem:[%s2 + $0x28] sm:$0xff]
    %v1157 = vld [vmem:[#allocation2] sm:$0x3f]
    %v1159 = vrot.slane %v1157, 1
    %v1160 = vrot.slane %v1157, 2
    %v1161 = vrot.slane %v1157, 3
    %vm1162 = vcmask 1040384
    %v1163 = vsel %vm1162, %v1157, %v1159
    %vm1164 = vcmask 1042434
    %v1165 = vsel %vm1164, %v1160, %v1161
    %vm1166 = vcmask 1041408
    %v1167 = vsel %vm1166, %v1163, %v1165
    %vm1168 = vcmask 1041409
    %v1169 = vsel %vm1168, %v1157, %v1159
    %vm1170 = vcmask 1043459
    %v1171 = vsel %vm1170, %v1160, %v1161
    %vm1172 = vcmask 1042433
    %v1173 = vsel %vm1172, %v1169, %v1171
    %v1174 = vrot.slane %v1173, 1
    %v1175 = vperm.slane %v1167, 0
    %v1176 = vperm.slane %v1167, 1
    %v1177 = vperm.slane %v1167, 2
    %v1178 = vperm.slane %v1174, 0
    %v1179 = vperm.slane %v1174, 1
    %v1180 = vperm.slane %v1174, 2
    %v1187 = vadd.f32 %v1151, %v1175
    %v1188 = vadd.f32 %v1152, %v1176
    %v1189 = vadd.f32 %v1153, %v1177
    %v1190 = vadd.f32 %v1154, %v1178
    %v1191 = vadd.f32 %v1155, %v1179
    %v1192 = vadd.f32 %v1156, %v1180
    %1193 = vst [vmem:[#allocation3] sm:$0xff] %v1187
    %1194 = vst [vmem:[#allocation3 + $0x8] sm:$0xff] %v1188
    %1195 = vst [vmem:[#allocation3 + $0x10] sm:$0xff] %v1189
    %1196 = vst [vmem:[#allocation3 + $0x18] sm:$0xff] %v1190
    %1197 = vst [vmem:[#allocation3 + $0x20] sm:$0xff] %v1191
    %1198 = vst [vmem:[#allocation3 + $0x28] sm:$0xff] %v1192
    // Predicated region
    $region54: #{block_forward.1} parent=1 // pred_check
      _
    $region55: #{block_forward.1} parent=1 // pred_check_branch
      %1200 = sbr.rel (0) target = $region57
    $region56: #{block_forward.1} parent=1 // pred_region
      %1202 = vsyncadd [#allocation4], 0
      %s1203 = sshll.u32 [#allocation3], 4
      %s1204 = int_to_ptr.vmem [resolvable:$true] %s1203
      %s1205 = sshll.u32 %s12, 4
      %s1206 = int_to_ptr.hbm [resolvable:$true] %s1205
      %1211 = dma.vmem_to_hbm [thread:$0]  %s1204, 768, %s1206, [#allocation4], 384, 384, 24
    $region57: #{block_forward.1} parent=1 // pred_fallthru
      _
    // Predicated region
    $region58: #{block_forward.1} parent=1 // pred_check
      _
    $region59: #{block_forward.1} parent=1 // pred_check_branch
      %1213 = sbr.rel (0) target = $region61
    $region60: #{block_forward.1} parent=1 // pred_region
      %1215 = dma.done [#allocation4], 768
    $region61: #{block_forward.1} parent=1 // pred_fallthru
      _
    %1216 = vsyncpa [#allocation4], 1

</llo_original>
